<compile_context>
chip_gen: v5e
topology: v5e:2x2
jax: 0.10.0
libtpu: 0.0.40
codegen_flags: <defaults>
</compile_context>

<pallas_src>
import jax
import jax.numpy as jnp
from jax.experimental import pallas as pl
from jax.experimental.pallas import tpu as pltpu

LEAKY_SLOPE = 0.01              # torch.nn.LeakyReLU default negative_slope
BN_EPS = 1e-5                   # torch.nn.BatchNorm2d default eps


def _leaky(x):
    # max(x, a*x) == LeakyReLU(x) for 0 < a < 1; 2 VALU ops instead of cmp+select+mul.
    return jnp.maximum(x, LEAKY_SLOPE * x)


def _bn_scale_shift(sum_val, sq_val, gamma, beta, n_total):
    """Fused one-pass BN: scale = gamma*rsqrt(var+eps), shift = beta - mean*scale.
    TODO(synk): one-pass variance (E[x^2]-mean^2) in f32 can lose precision when
    |mean| >> std; consider a shifted/two-pass variance for production activations."""
    mean = sum_val * (1.0 / n_total)
    var = jnp.maximum(sq_val * (1.0 / n_total) - mean * mean, 0.0)
    scale = gamma * jax.lax.rsqrt(var + BN_EPS)
    shift = beta - mean * scale
    return scale, shift


def _accum_moments(v, s1_ref, s2_ref):
    """Accumulate per-lane partial sum / sum^2 of v (C, tile) into (C, 128) accumulator
    blocks.  Pure aligned VALU slice-adds: no per-iteration cross-lane (XLU) reduce and no
    lane-width-1 masked stores; the final 128-lane reduce happens in the JAX finalize."""
    C, t = v.shape
    if t % 128:
        # Only reachable via the full-HW fallback tile (HW % 128 != 0): zero-pad the lanes.
        v = jnp.concatenate([v, jnp.zeros((C, 128 - t % 128), v.dtype)], axis=1)
        t = v.shape[1]
    p1 = jnp.zeros((C, 128), jnp.float32)
    p2 = jnp.zeros((C, 128), jnp.float32)
    for j in range(t // 128):
        blk = v[:, j * 128:(j + 1) * 128]
        p1 = p1 + blk
        p2 = p2 + blk * blk
    s1_ref[...] += p1
    s2_ref[...] += p2


# -------- pass 1: per-(b,c) lane-partial sum / sum^2 of y = conv1(x)  (+ bf16 x copy) --------
def _pass1_kernel(x_ref, w_ref, cb_ref, *out_refs):
    # out_refs = (xh_ref, s1_ref, s2_ref) when a low-precision stream copy of x is emitted,
    # otherwise (s1_ref, s2_ref).
    s1_ref, s2_ref = out_refs[-2], out_refs[-1]

    @pl.when(pl.program_id(1) == 0)           # zero this batch's resident accumulator block
    def _():
        s1_ref[...] = jnp.zeros_like(s1_ref)
        s2_ref[...] = jnp.zeros_like(s2_ref)

    if len(out_refs) == 3:                    # bf16 copy of x for the later HBM-bound passes
        out_refs[0][...] = x_ref[...].astype(out_refs[0].dtype)

    # f32 conv here so the BN1 batch statistics stay accurate.
    y = jnp.dot(w_ref[...], x_ref[...], preferred_element_type=jnp.float32) + cb_ref[...]
    _accum_moments(y, s1_ref, s2_ref)


# ---- pass 2: per-(b,c) lane-partial sum / sum^2 of ya = leaky(w1f @ x + b1f)  (SE + BN2) ----
def _pass2_kernel(x_ref, w_ref, b_ref, s1_ref, s2_ref):
    @pl.when(pl.program_id(1) == 0)
    def _():
        s1_ref[...] = jnp.zeros_like(s1_ref)
        s2_ref[...] = jnp.zeros_like(s2_ref)

    ya = _leaky(jnp.dot(w_ref[...], x_ref[...], preferred_element_type=jnp.float32)
                + b_ref[...])
    _accum_moments(ya, s1_ref, s2_ref)


# ---------------- pass 3: out = leaky(A[b,c] * leaky(w1f @ x + b1f) + shift2[c]) ----------------
def _pass3_kernel(x_ref, w_ref, b_ref, a_ref, c_ref, o_ref):
    ya = _leaky(jnp.dot(w_ref[...], x_ref[...], preferred_element_type=jnp.float32)
                + b_ref[...])
    o_ref[...] = _leaky(a_ref[...] * ya + c_ref[...]).astype(o_ref.dtype)


def _vmem_config():
    """Generation-aware VMEM limit and tile budget (v5e/v6e: 128 MiB VMEM, v7x: 64 MiB)."""
    try:
        cap = int(pltpu.get_tpu_info().vmem_capacity_bytes)
    except Exception:
        cap = 64 << 20          # conservative fallback: assume v7x-sized VMEM
    vmem_limit = min(int(cap * 0.75), 112 << 20)
    tile_budget = min(int(cap * 0.40), 56 << 20)
    return vmem_limit, tile_budget


def _pick_tile(hw, cin, cout, budget_bytes, max_tile=8192):
    """Largest 128-multiple divisor of HW (capped) whose double-buffered blocks fit the
    VMEM budget (f32-conservative estimate, weights included)."""
    if hw % 128 != 0:
        # TODO(synk): pad/mask the last spatial tile instead of a full-extent block.
        return hw
    per_lane = 8 * max(2 * cin, cin + cout)      # worst pass, double-buffered, f32-conservative
    fixed = 8 * cout * cin + (2 << 20)           # double-buffered weights + slack
    best, t, cap = 128, 128, min(hw, max_tile)
    while t <= cap:
        if hw % t == 0 and per_lane * t + fixed <= budget_bytes:
            best = t
        t += 128
    return best


def conv2d_channel(x_nchw, params, *, io_dtype=jnp.bfloat16):
    B, Cin, H, W = x_nchw.shape
    Cout, cin_w = params['conv_w'].shape
    assert cin_w == Cin
    assert Cout % 8 == 0, "Cout must be a multiple of 8 (SE reduction ratio / sublane blocks)"
    HW = H * W
    n_total = float(B * HW)
    x = x_nchw.reshape(B, Cin, HW)          # NCHW -> (B, Cin, HW): pure reshape, no transpose

    vmem_limit, tile_budget = _vmem_config()
    tile = _pick_tile(HW, Cin, Cout, tile_budget)
    T = HW // tile
    stream_copy = (jnp.dtype(io_dtype) != x.dtype)   # emit a low-precision copy of x?

    # --- BlockSpecs (channels in sublanes, spatial in lanes) ---
    x_spec = pl.BlockSpec((None, Cin, tile), lambda b, t: (b, 0, t))
    w_spec = pl.BlockSpec((Cout, Cin), lambda b, t: (0, 0))
    cvec_spec = pl.BlockSpec((Cout, 1), lambda b, t: (0, 0))       # per-channel columns
    bvec_spec = pl.BlockSpec((Cout, 1), lambda b, t: (b, 0))       # per-(batch,channel) columns
    lanestat_spec = pl.BlockSpec((Cout, 128), lambda b, t: (b, 0)) # per-(b,c) lane partials
    out_spec = pl.BlockSpec((None, Cout, tile), lambda b, t: (b, 0, t))

    cp_reduce = pltpu.CompilerParams(dimension_semantics=("parallel", "arbitrary"),
                                     vmem_limit_bytes=vmem_limit)
    cp_par = pltpu.CompilerParams(dimension_semantics=("parallel", "parallel"),
                                  vmem_limit_bytes=vmem_limit)

    stat = jax.ShapeDtypeStruct((B * Cout, 128), jnp.float32)

    # ---- pass 1: BN1 batch statistics (+ optional bf16 stream copy of x) ----
    p1_out_shape = (stat, stat)
    p1_out_specs = (lanestat_spec, lanestat_spec)
    if stream_copy:
        p1_out_shape = (jax.ShapeDtypeStruct((B, Cin, HW), io_dtype),) + p1_out_shape
        p1_out_specs = (x_spec,) + p1_out_specs
    p1 = pl.pallas_call(
        _pass1_kernel,
        grid=(B, T),
        in_specs=[x_spec, w_spec, cvec_spec],
        out_specs=p1_out_specs,
        out_shape=p1_out_shape,
        compiler_params=cp_reduce,
    )(x, params['conv_w'], params['conv_b'])
    if stream_copy:
        xs, y_s1, y_s2 = p1
    else:
        xs = x
        y_s1, y_s2 = p1

    # BN1 finalize (tiny): reduce lane partials + batch, then fold BN1 into the conv.
    sum_y = y_s1.reshape(B, Cout, 128).sum(axis=(0, 2))[:, None]
    sq_y = y_s2.reshape(B, Cout, 128).sum(axis=(0, 2))[:, None]
    scale1, shift1 = _bn_scale_shift(sum_y, sq_y, params['bn1_g'], params['bn1_b'], n_total)
    w1f = (scale1 * params['conv_w']).astype(io_dtype)     # ya = leaky(w1f @ x + b1f)
    b1f = scale1 * params['conv_b'] + shift1               # (Cout, 1) f32

    # ---- pass 2: SE pool + second-moment stats of the activated tensor ----
    a_s1, a_s2 = pl.pallas_call(
        _pass2_kernel,
        grid=(B, T),
        in_specs=[x_spec, w_spec, cvec_spec],
        out_specs=(lanestat_spec, lanestat_spec),
        out_shape=(stat, stat),
        compiler_params=cp_reduce,
    )(xs, w1f, b1f)

    # ---- tiny O(B*Cout) finalize: SE gates + BN2 scale/shift, constant-folded for pass 3 ----
    hp = jax.lax.Precision.HIGHEST
    s1 = a_s1.reshape(B, Cout, 128).sum(axis=2)            # sum_hw(ya)   per (b, c)
    s2 = a_s2.reshape(B, Cout, 128).sum(axis=2)            # sum_hw(ya^2) per (b, c)
    pool = s1 / HW                                         # global average pool
    h = _leaky(jnp.dot(pool, params['fc1_w'], precision=hp) + params['fc1_b'])
    g = jax.nn.sigmoid(jnp.dot(h, params['fc2_w'], precision=hp) + params['fc2_b'])
    # z = g[b,c]*ya  =>  BN2 batch stats derived analytically from s1/s2 and the gates.
    sum_z = jnp.sum(g * s1, axis=0)[:, None]               # (Cout, 1)
    sq_z = jnp.sum(g * g * s2, axis=0)[:, None]
    scale2, shift2 = _bn_scale_shift(sum_z, sq_z, params['bn2_g'], params['bn2_b'], n_total)
    a_gate = (g * scale2.reshape(1, Cout)).reshape(B * Cout, 1)   # A[b,c] = gate * scale2

    # ---- pass 3: apply everything, lane-dense bf16 output stores ----
    out = pl.pallas_call(
        _pass3_kernel,
        grid=(B, T),
        in_specs=[x_spec, w_spec, cvec_spec, bvec_spec, cvec_spec],
        out_specs=out_spec,
        out_shape=jax.ShapeDtypeStruct((B, Cout, HW), io_dtype),
        compiler_params=cp_par,
    )(xs, w1f, b1f, a_gate, shift2)

    return out.reshape(B, Cout, H, W)       # already channel-major: pure reshape, no transpose


def init_params(key, num_in_filters, num_out_filters):
    """Deterministic synthetic parameters (shapes match the PyTorch module)."""
    cr = num_out_filters // 8               # ChannelSELayer reduction_ratio = 8
    ks = jax.random.split(key, 8)
    s = 0.1
    return {
        # Conv2d(Cin, Cout, 1, bias=True) weight stored as (Cout, Cin)
        'conv_w': s * jax.random.normal(ks[0], (num_out_filters, num_in_filters), jnp.float32),
        'conv_b': s * jax.random.normal(ks[1], (num_out_filters, 1), jnp.float32),
        # outer BatchNorm2d
        'bn1_g': 1.0 + s * jax.random.normal(ks[2], (num_out_filters, 1), jnp.float32),
        'bn1_b': s * jax.random.normal(ks[3], (num_out_filters, 1), jnp.float32),
        # SE fc1 / fc2 stored as (in, out) so the wrapper does x @ W
        'fc1_w': s * jax.random.normal(ks[4], (num_out_filters, cr), jnp.float32),
        'fc1_b': s * jax.random.normal(ks[5], (1, cr), jnp.float32),
        'fc2_w': s * jax.random.normal(ks[6], (cr, num_out_filters), jnp.float32),
        'fc2_b': s * jax.random.normal(ks[7], (1, num_out_filters), jnp.float32),
        # SE's BatchNorm2d
        'bn2_g': jnp.ones((num_out_filters, 1), jnp.float32),
        'bn2_b': jnp.zeros((num_out_filters, 1), jnp.float32),
    }


def conv2d_channel_reference(x, p):
    """Pure-JAX NCHW f32 reference of the torch forward (training-mode BN)."""
    hp = jax.lax.Precision.HIGHEST
    y = jnp.einsum('oc,bchw->bohw', p['conv_w'], x, precision=hp) \
        + p['conv_b'].reshape(1, -1, 1, 1)

    def bn(v, g, b):
        m = jnp.mean(v, axis=(0, 2, 3), keepdims=True)
        var = jnp.mean((v - m) ** 2, axis=(0, 2, 3), keepdims=True)
        return (v - m) * jax.lax.rsqrt(var + BN_EPS) * g.reshape(1, -1, 1, 1) \
               + b.reshape(1, -1, 1, 1)

    ya = _leaky(bn(y, p['bn1_g'], p['bn1_b']))
    pool = jnp.mean(ya, axis=(2, 3))
    h = _leaky(jnp.dot(pool, p['fc1_w'], precision=hp) + p['fc1_b'])
    g = jax.nn.sigmoid(jnp.dot(h, p['fc2_w'], precision=hp) + p['fc2_b'])
    z = ya * g[:, :, None, None]
    return _leaky(bn(z, p['bn2_g'], p['bn2_b']))


if __name__ == "__main__":
    B, Cin, Cout, H, W = 2, 8, 16, 16, 16   # Cout must be a multiple of the SE ratio (8)
    key = jax.random.PRNGKey(0)
    kx, kp = jax.random.split(key)
    x = jax.random.normal(kx, (B, Cin, H, W), jnp.float32)
    params = init_params(kp, Cin, Cout)

    out = jax.jit(conv2d_channel)(x, params)
    jax.block_until_ready(out)
    assert out.shape == (B, Cout, H, W)

    ref = conv2d_channel_reference(x, params)
    # Mixed rel/abs tolerance sized for bf16 HBM streaming of x and the output.
    err = float(jnp.max(jnp.abs(out.astype(jnp.float32) - ref) / (1.0 + jnp.abs(ref))))
    assert err < 2.5e-2, f"normalized error vs reference: {err}"
    print("KERNEL_OK")
</pallas_src>

<mosaic_0001>
module attributes {stable_mosaic.version = 11 : i64} {
  func.func @_pass1_kernel(%arg0: i32, %arg1: i32, %arg2: memref<1x8x256xf32, #tpu.memory_space<vmem>>, %arg3: memref<16x8xf32, #tpu.memory_space<vmem>>, %arg4: memref<16x1xf32, #tpu.memory_space<vmem>>, %arg5: memref<1x8x256xbf16, #tpu.memory_space<vmem>>, %arg6: memref<16x128xf32, #tpu.memory_space<vmem>>, %arg7: memref<16x128xf32, #tpu.memory_space<vmem>>) attributes {dimension_semantics = [#tpu.dimension_semantics<parallel>, #tpu.dimension_semantics<arbitrary>], iteration_bounds = array<i64: 2, 1>, scalar_prefetch = 0 : i64, scratch_operands = 0 : i64, tpu.core_type = #tpu.core_type<tc>, window_params = [{transform_indices = @transform_0, window_bounds = array<i64: 1, 8, 256>}, {pipeline_mode = #tpu.pipeline_mode<synchronous>, transform_indices = @transform_1, window_bounds = array<i64: 16, 8>}, {pipeline_mode = #tpu.pipeline_mode<synchronous>, transform_indices = @transform_2, window_bounds = array<i64: 16, 1>}, {transform_indices = @transform_3, window_bounds = array<i64: 1, 8, 256>}, {transform_indices = @transform_4, window_bounds = array<i64: 16, 128>}, {transform_indices = @transform_5, window_bounds = array<i64: 16, 128>}]} {
    %c0_i32 = arith.constant 0 : i32
    %0 = arith.cmpi eq, %arg1, %c0_i32 : i32
    %1 = arith.extui %0 : i1 to i32
    %c0_i32_0 = arith.constant 0 : i32
    %2 = arith.cmpi ne, %1, %c0_i32_0 : i32
    scf.if %2 {
      %cst_23 = arith.constant 0.000000e+00 : f32
      %32 = vector.broadcast %cst_23 : f32 to vector<16x128xf32>
      %c0_24 = arith.constant 0 : index
      %c0_25 = arith.constant 0 : index
      %33 = vector.load %arg6[%c0_24, %c0_25] : memref<16x128xf32, #tpu.memory_space<vmem>>, vector<16x128xf32>
      tpu.vector_store %arg6[%c0_24, %c0_25], %32 {strides = array<i32>} : memref<16x128xf32, #tpu.memory_space<vmem>>, vector<16x128xf32>,
      %cst_26 = arith.constant 0.000000e+00 : f32
      %34 = vector.broadcast %cst_26 : f32 to vector<16x128xf32>
      %c0_27 = arith.constant 0 : index
      %c0_28 = arith.constant 0 : index
      %35 = vector.load %arg7[%c0_27, %c0_28] : memref<16x128xf32, #tpu.memory_space<vmem>>, vector<16x128xf32>
      tpu.vector_store %arg7[%c0_27, %c0_28], %34 {strides = array<i32>} : memref<16x128xf32, #tpu.memory_space<vmem>>, vector<16x128xf32>,
    } else {
    }
    %c0 = arith.constant 0 : index
    %c0_1 = arith.constant 0 : index
    %c0_2 = arith.constant 0 : index
    %3 = vector.load %arg2[%c0, %c0_1, %c0_2] : memref<1x8x256xf32, #tpu.memory_space<vmem>>, vector<1x8x256xf32>
    %4 = vector.shape_cast %3 : vector<1x8x256xf32> to vector<8x256xf32>
    %5 = arith.truncf %4 : vector<8x256xf32> to vector<8x256xbf16>
    %c0_3 = arith.constant 0 : index
    %c0_4 = arith.constant 0 : index
    %c0_5 = arith.constant 0 : index
    %6 = vector.load %arg5[%c0_3, %c0_4, %c0_5] : memref<1x8x256xbf16, #tpu.memory_space<vmem>>, vector<1x8x256xbf16>
    %7 = vector.shape_cast %6 : vector<1x8x256xbf16> to vector<8x256xbf16>
    %8 = vector.shape_cast %5 : vector<8x256xbf16> to vector<1x8x256xbf16>
    tpu.vector_store %arg5[%c0_3, %c0_4, %c0_5], %8 {strides = array<i32>} : memref<1x8x256xbf16, #tpu.memory_space<vmem>>, vector<1x8x256xbf16>,
    %c0_6 = arith.constant 0 : index
    %c0_7 = arith.constant 0 : index
    %9 = vector.load %arg3[%c0_6, %c0_7] : memref<16x8xf32, #tpu.memory_space<vmem>>, vector<16x8xf32>
    %c0_8 = arith.constant 0 : index
    %c0_9 = arith.constant 0 : index
    %c0_10 = arith.constant 0 : index
    %10 = vector.load %arg2[%c0_8, %c0_9, %c0_10] : memref<1x8x256xf32, #tpu.memory_space<vmem>>, vector<1x8x256xf32>
    %11 = vector.shape_cast %10 : vector<1x8x256xf32> to vector<8x256xf32>
    %cst = arith.constant dense<0.000000e+00> : vector<16x256xf32>
    %12 = tpu.matmul %9, %11, %cst {dimension_numbers = #tpu.dot_dimension_numbers<[1], [0], [0], [1], [0, 0, 1, 1], [], []>} : vector<16x8xf32>, vector<8x256xf32>, vector<16x256xf32> -> vector<16x256xf32>
    %c0_11 = arith.constant 0 : index
    %c0_12 = arith.constant 0 : index
    %13 = vector.load %arg4[%c0_11, %c0_12] : memref<16x1xf32, #tpu.memory_space<vmem>>, vector<16x1xf32>
    %14 = vector.broadcast %13 : vector<16x1xf32> to vector<16x256xf32>
    %15 = arith.addf %12, %14 : vector<16x256xf32>
    %cst_13 = arith.constant 0.000000e+00 : f32
    %16 = vector.broadcast %cst_13 : f32 to vector<16x128xf32>
    %cst_14 = arith.constant 0.000000e+00 : f32
    %17 = vector.broadcast %cst_14 : f32 to vector<16x128xf32>
    %18 = vector.extract_strided_slice %15 {offsets = [0, 0], sizes = [16, 128], strides = [1, 1]} : vector<16x256xf32> to vector<16x128xf32>
    %19 = arith.addf %16, %18 : vector<16x128xf32>
    %20 = arith.mulf %18, %18 : vector<16x128xf32>
    %21 = arith.addf %17, %20 : vector<16x128xf32>
    %22 = vector.extract_strided_slice %15 {offsets = [0, 128], sizes = [16, 128], strides = [1, 1]} : vector<16x256xf32> to vector<16x128xf32>
    %23 = arith.addf %19, %22 : vector<16x128xf32>
    %24 = arith.mulf %22, %22 : vector<16x128xf32>
    %25 = arith.addf %21, %24 : vector<16x128xf32>
    %c0_15 = arith.constant 0 : index
    %c0_16 = arith.constant 0 : index
    %26 = vector.load %arg6[%c0_15, %c0_16] : memref<16x128xf32, #tpu.memory_space<vmem>>, vector<16x128xf32>
    %27 = arith.addf %26, %23 : vector<16x128xf32>
    %c0_17 = arith.constant 0 : index
    %c0_18 = arith.constant 0 : index
    %28 = vector.load %arg6[%c0_17, %c0_18] : memref<16x128xf32, #tpu.memory_space<vmem>>, vector<16x128xf32>
    tpu.vector_store %arg6[%c0_17, %c0_18], %27 {strides = array<i32>} : memref<16x128xf32, #tpu.memory_space<vmem>>, vector<16x128xf32>,
    %c0_19 = arith.constant 0 : index
    %c0_20 = arith.constant 0 : index
    %29 = vector.load %arg7[%c0_19, %c0_20] : memref<16x128xf32, #tpu.memory_space<vmem>>, vector<16x128xf32>
    %30 = arith.addf %29, %25 : vector<16x128xf32>
    %c0_21 = arith.constant 0 : index
    %c0_22 = arith.constant 0 : index
    %31 = vector.load %arg7[%c0_21, %c0_22] : memref<16x128xf32, #tpu.memory_space<vmem>>, vector<16x128xf32>
    tpu.vector_store %arg7[%c0_21, %c0_22], %30 {strides = array<i32>} : memref<16x128xf32, #tpu.memory_space<vmem>>, vector<16x128xf32>,
    return
  }
  func.func @transform_0(%arg0: i32, %arg1: i32) -> (i32, i32, i32) {
    %c0_i32 = arith.constant 0 : i32
    %c0_i32_0 = arith.constant 0 : i32
    return %arg0, %c0_i32, %arg1 : i32, i32, i32
  }
  func.func @transform_1(%arg0: i32, %arg1: i32) -> (i32, i32) {
    %c0_i32 = arith.constant 0 : i32
    %c0_i32_0 = arith.constant 0 : i32
    %c0_i32_1 = arith.constant 0 : i32
    return %c0_i32, %c0_i32_0 : i32, i32
  }
  func.func @transform_2(%arg0: i32, %arg1: i32) -> (i32, i32) {
    %c0_i32 = arith.constant 0 : i32
    %c0_i32_0 = arith.constant 0 : i32
    %c0_i32_1 = arith.constant 0 : i32
    return %c0_i32, %c0_i32_0 : i32, i32
  }
  func.func @transform_3(%arg0: i32, %arg1: i32) -> (i32, i32, i32) {
    %c0_i32 = arith.constant 0 : i32
    %c0_i32_0 = arith.constant 0 : i32
    return %arg0, %c0_i32, %arg1 : i32, i32, i32
  }
  func.func @transform_4(%arg0: i32, %arg1: i32) -> (i32, i32) {
    %c0_i32 = arith.constant 0 : i32
    %c0_i32_0 = arith.constant 0 : i32
    return %arg0, %c0_i32 : i32, i32
  }
  func.func @transform_5(%arg0: i32, %arg1: i32) -> (i32, i32) {
    %c0_i32 = arith.constant 0 : i32
    %c0_i32_0 = arith.constant 0 : i32
    return %arg0, %c0_i32 : i32, i32
  }
}

module attributes {stable_mosaic.version = 11 : i64} {
  func.func @_pass2_kernel(%arg0: i32, %arg1: i32, %arg2: memref<1x8x256xbf16, #tpu.memory_space<vmem>>, %arg3: memref<16x8xbf16, #tpu.memory_space<vmem>>, %arg4: memref<16x1xf32, #tpu.memory_space<vmem>>, %arg5: memref<16x128xf32, #tpu.memory_space<vmem>>, %arg6: memref<16x128xf32, #tpu.memory_space<vmem>>) attributes {dimension_semantics = [#tpu.dimension_semantics<parallel>, #tpu.dimension_semantics<arbitrary>], iteration_bounds = array<i64: 2, 1>, scalar_prefetch = 0 : i64, scratch_operands = 0 : i64, tpu.core_type = #tpu.core_type<tc>, window_params = [{transform_indices = @transform_0, window_bounds = array<i64: 1, 8, 256>}, {pipeline_mode = #tpu.pipeline_mode<synchronous>, transform_indices = @transform_1, window_bounds = array<i64: 16, 8>}, {pipeline_mode = #tpu.pipeline_mode<synchronous>, transform_indices = @transform_2, window_bounds = array<i64: 16, 1>}, {transform_indices = @transform_3, window_bounds = array<i64: 16, 128>}, {transform_indices = @transform_4, window_bounds = array<i64: 16, 128>}]} {
    %c0_i32 = arith.constant 0 : i32
    %0 = arith.cmpi eq, %arg1, %c0_i32 : i32
    %1 = arith.extui %0 : i1 to i32
    %c0_i32_0 = arith.constant 0 : i32
    %2 = arith.cmpi ne, %1, %c0_i32_0 : i32
    scf.if %2 {
      %cst_18 = arith.constant 0.000000e+00 : f32
      %29 = vector.broadcast %cst_18 : f32 to vector<16x128xf32>
      %c0_19 = arith.constant 0 : index
      %c0_20 = arith.constant 0 : index
      %30 = vector.load %arg5[%c0_19, %c0_20] : memref<16x128xf32, #tpu.memory_space<vmem>>, vector<16x128xf32>
      tpu.vector_store %arg5[%c0_19, %c0_20], %29 {strides = array<i32>} : memref<16x128xf32, #tpu.memory_space<vmem>>, vector<16x128xf32>,
      %cst_21 = arith.constant 0.000000e+00 : f32
      %31 = vector.broadcast %cst_21 : f32 to vector<16x128xf32>
      %c0_22 = arith.constant 0 : index
      %c0_23 = arith.constant 0 : index
      %32 = vector.load %arg6[%c0_22, %c0_23] : memref<16x128xf32, #tpu.memory_space<vmem>>, vector<16x128xf32>
      tpu.vector_store %arg6[%c0_22, %c0_23], %31 {strides = array<i32>} : memref<16x128xf32, #tpu.memory_space<vmem>>, vector<16x128xf32>,
    } else {
    }
    %c0 = arith.constant 0 : index
    %c0_1 = arith.constant 0 : index
    %3 = vector.load %arg3[%c0, %c0_1] : memref<16x8xbf16, #tpu.memory_space<vmem>>, vector<16x8xbf16>
    %c0_2 = arith.constant 0 : index
    %c0_3 = arith.constant 0 : index
    %c0_4 = arith.constant 0 : index
    %4 = vector.load %arg2[%c0_2, %c0_3, %c0_4] : memref<1x8x256xbf16, #tpu.memory_space<vmem>>, vector<1x8x256xbf16>
    %5 = vector.shape_cast %4 : vector<1x8x256xbf16> to vector<8x256xbf16>
    %cst = arith.constant dense<0.000000e+00> : vector<16x256xf32>
    %6 = tpu.matmul %3, %5, %cst {dimension_numbers = #tpu.dot_dimension_numbers<[1], [0], [0], [1], [0, 0, 1, 1], [], []>} : vector<16x8xbf16>, vector<8x256xbf16>, vector<16x256xf32> -> vector<16x256xf32>
    %c0_5 = arith.constant 0 : index
    %c0_6 = arith.constant 0 : index
    %7 = vector.load %arg4[%c0_5, %c0_6] : memref<16x1xf32, #tpu.memory_space<vmem>>, vector<16x1xf32>
    %8 = vector.broadcast %7 : vector<16x1xf32> to vector<16x256xf32>
    %9 = arith.addf %6, %8 : vector<16x256xf32>
    %cst_7 = arith.constant 0.00999999977 : f32
    %10 = vector.broadcast %cst_7 : f32 to vector<16x256xf32>
    %11 = arith.mulf %10, %9 : vector<16x256xf32>
    %12 = arith.maximumf %9, %11 : vector<16x256xf32>
    %cst_8 = arith.constant 0.000000e+00 : f32
    %13 = vector.broadcast %cst_8 : f32 to vector<16x128xf32>
    %cst_9 = arith.constant 0.000000e+00 : f32
    %14 = vector.broadcast %cst_9 : f32 to vector<16x128xf32>
    %15 = vector.extract_strided_slice %12 {offsets = [0, 0], sizes = [16, 128], strides = [1, 1]} : vector<16x256xf32> to vector<16x128xf32>
    %16 = arith.addf %13, %15 : vector<16x128xf32>
    %17 = arith.mulf %15, %15 : vector<16x128xf32>
    %18 = arith.addf %14, %17 : vector<16x128xf32>
    %19 = vector.extract_strided_slice %12 {offsets = [0, 128], sizes = [16, 128], strides = [1, 1]} : vector<16x256xf32> to vector<16x128xf32>
    %20 = arith.addf %16, %19 : vector<16x128xf32>
    %21 = arith.mulf %19, %19 : vector<16x128xf32>
    %22 = arith.addf %18, %21 : vector<16x128xf32>
    %c0_10 = arith.constant 0 : index
    %c0_11 = arith.constant 0 : index
    %23 = vector.load %arg5[%c0_10, %c0_11] : memref<16x128xf32, #tpu.memory_space<vmem>>, vector<16x128xf32>
    %24 = arith.addf %23, %20 : vector<16x128xf32>
    %c0_12 = arith.constant 0 : index
    %c0_13 = arith.constant 0 : index
    %25 = vector.load %arg5[%c0_12, %c0_13] : memref<16x128xf32, #tpu.memory_space<vmem>>, vector<16x128xf32>
    tpu.vector_store %arg5[%c0_12, %c0_13], %24 {strides = array<i32>} : memref<16x128xf32, #tpu.memory_space<vmem>>, vector<16x128xf32>,
    %c0_14 = arith.constant 0 : index
    %c0_15 = arith.constant 0 : index
    %26 = vector.load %arg6[%c0_14, %c0_15] : memref<16x128xf32, #tpu.memory_space<vmem>>, vector<16x128xf32>
    %27 = arith.addf %26, %22 : vector<16x128xf32>
    %c0_16 = arith.constant 0 : index
    %c0_17 = arith.constant 0 : index
    %28 = vector.load %arg6[%c0_16, %c0_17] : memref<16x128xf32, #tpu.memory_space<vmem>>, vector<16x128xf32>
    tpu.vector_store %arg6[%c0_16, %c0_17], %27 {strides = array<i32>} : memref<16x128xf32, #tpu.memory_space<vmem>>, vector<16x128xf32>,
    return
  }
  func.func @transform_0(%arg0: i32, %arg1: i32) -> (i32, i32, i32) {
    %c0_i32 = arith.constant 0 : i32
    %c0_i32_0 = arith.constant 0 : i32
    return %arg0, %c0_i32, %arg1 : i32, i32, i32
  }
  func.func @transform_1(%arg0: i32, %arg1: i32) -> (i32, i32) {
    %c0_i32 = arith.constant 0 : i32
    %c0_i32_0 = arith.constant 0 : i32
    %c0_i32_1 = arith.constant 0 : i32
    return %c0_i32, %c0_i32_0 : i32, i32
  }
  func.func @transform_2(%arg0: i32, %arg1: i32) -> (i32, i32) {
    %c0_i32 = arith.constant 0 : i32
    %c0_i32_0 = arith.constant 0 : i32
    %c0_i32_1 = arith.constant 0 : i32
    return %c0_i32, %c0_i32_0 : i32, i32
  }
  func.func @transform_3(%arg0: i32, %arg1: i32) -> (i32, i32) {
    %c0_i32 = arith.constant 0 : i32
    %c0_i32_0 = arith.constant 0 : i32
    return %arg0, %c0_i32 : i32, i32
  }
  func.func @transform_4(%arg0: i32, %arg1: i32) -> (i32, i32) {
    %c0_i32 = arith.constant 0 : i32
    %c0_i32_0 = arith.constant 0 : i32
    return %arg0, %c0_i32 : i32, i32
  }
}

module attributes {stable_mosaic.version = 11 : i64} {
  func.func @_pass3_kernel(%arg0: i32, %arg1: i32, %arg2: memref<1x8x256xbf16, #tpu.memory_space<vmem>>, %arg3: memref<16x8xbf16, #tpu.memory_space<vmem>>, %arg4: memref<16x1xf32, #tpu.memory_space<vmem>>, %arg5: memref<16x1xf32, #tpu.memory_space<vmem>>, %arg6: memref<16x1xf32, #tpu.memory_space<vmem>>, %arg7: memref<1x16x256xbf16, #tpu.memory_space<vmem>>) attributes {dimension_semantics = [#tpu.dimension_semantics<parallel>, #tpu.dimension_semantics<parallel>], iteration_bounds = array<i64: 2, 1>, scalar_prefetch = 0 : i64, scratch_operands = 0 : i64, tpu.core_type = #tpu.core_type<tc>, window_params = [{transform_indices = @transform_0, window_bounds = array<i64: 1, 8, 256>}, {pipeline_mode = #tpu.pipeline_mode<synchronous>, transform_indices = @transform_1, window_bounds = array<i64: 16, 8>}, {pipeline_mode = #tpu.pipeline_mode<synchronous>, transform_indices = @transform_2, window_bounds = array<i64: 16, 1>}, {transform_indices = @transform_3, window_bounds = array<i64: 16, 1>}, {pipeline_mode = #tpu.pipeline_mode<synchronous>, transform_indices = @transform_4, window_bounds = array<i64: 16, 1>}, {transform_indices = @transform_5, window_bounds = array<i64: 1, 16, 256>}]} {
    %c0 = arith.constant 0 : index
    %c0_0 = arith.constant 0 : index
    %0 = vector.load %arg3[%c0, %c0_0] : memref<16x8xbf16, #tpu.memory_space<vmem>>, vector<16x8xbf16>
    %c0_1 = arith.constant 0 : index
    %c0_2 = arith.constant 0 : index
    %c0_3 = arith.constant 0 : index
    %1 = vector.load %arg2[%c0_1, %c0_2, %c0_3] : memref<1x8x256xbf16, #tpu.memory_space<vmem>>, vector<1x8x256xbf16>
    %2 = vector.shape_cast %1 : vector<1x8x256xbf16> to vector<8x256xbf16>
    %cst = arith.constant dense<0.000000e+00> : vector<16x256xf32>
    %3 = tpu.matmul %0, %2, %cst {dimension_numbers = #tpu.dot_dimension_numbers<[1], [0], [0], [1], [0, 0, 1, 1], [], []>} : vector<16x8xbf16>, vector<8x256xbf16>, vector<16x256xf32> -> vector<16x256xf32>
    %c0_4 = arith.constant 0 : index
    %c0_5 = arith.constant 0 : index
    %4 = vector.load %arg4[%c0_4, %c0_5] : memref<16x1xf32, #tpu.memory_space<vmem>>, vector<16x1xf32>
    %5 = vector.broadcast %4 : vector<16x1xf32> to vector<16x256xf32>
    %6 = arith.addf %3, %5 : vector<16x256xf32>
    %cst_6 = arith.constant 0.00999999977 : f32
    %7 = vector.broadcast %cst_6 : f32 to vector<16x256xf32>
    %8 = arith.mulf %7, %6 : vector<16x256xf32>
    %9 = arith.maximumf %6, %8 : vector<16x256xf32>
    %c0_7 = arith.constant 0 : index
    %c0_8 = arith.constant 0 : index
    %10 = vector.load %arg5[%c0_7, %c0_8] : memref<16x1xf32, #tpu.memory_space<vmem>>, vector<16x1xf32>
    %11 = vector.broadcast %10 : vector<16x1xf32> to vector<16x256xf32>
    %12 = arith.mulf %11, %9 : vector<16x256xf32>
    %c0_9 = arith.constant 0 : index
    %c0_10 = arith.constant 0 : index
    %13 = vector.load %arg6[%c0_9, %c0_10] : memref<16x1xf32, #tpu.memory_space<vmem>>, vector<16x1xf32>
    %14 = vector.broadcast %13 : vector<16x1xf32> to vector<16x256xf32>
    %15 = arith.addf %12, %14 : vector<16x256xf32>
    %cst_11 = arith.constant 0.00999999977 : f32
    %16 = vector.broadcast %cst_11 : f32 to vector<16x256xf32>
    %17 = arith.mulf %16, %15 : vector<16x256xf32>
    %18 = arith.maximumf %15, %17 : vector<16x256xf32>
    %19 = arith.truncf %18 : vector<16x256xf32> to vector<16x256xbf16>
    %c0_12 = arith.constant 0 : index
    %c0_13 = arith.constant 0 : index
    %c0_14 = arith.constant 0 : index
    %20 = vector.load %arg7[%c0_12, %c0_13, %c0_14] : memref<1x16x256xbf16, #tpu.memory_space<vmem>>, vector<1x16x256xbf16>
    %21 = vector.shape_cast %20 : vector<1x16x256xbf16> to vector<16x256xbf16>
    %22 = vector.shape_cast %19 : vector<16x256xbf16> to vector<1x16x256xbf16>
    tpu.vector_store %arg7[%c0_12, %c0_13, %c0_14], %22 {strides = array<i32>} : memref<1x16x256xbf16, #tpu.memory_space<vmem>>, vector<1x16x256xbf16>,
    return
  }
  func.func @transform_0(%arg0: i32, %arg1: i32) -> (i32, i32, i32) {
    %c0_i32 = arith.constant 0 : i32
    %c0_i32_0 = arith.constant 0 : i32
    return %arg0, %c0_i32, %arg1 : i32, i32, i32
  }
  func.func @transform_1(%arg0: i32, %arg1: i32) -> (i32, i32) {
    %c0_i32 = arith.constant 0 : i32
    %c0_i32_0 = arith.constant 0 : i32
    %c0_i32_1 = arith.constant 0 : i32
    return %c0_i32, %c0_i32_0 : i32, i32
  }
  func.func @transform_2(%arg0: i32, %arg1: i32) -> (i32, i32) {
    %c0_i32 = arith.constant 0 : i32
    %c0_i32_0 = arith.constant 0 : i32
    %c0_i32_1 = arith.constant 0 : i32
    return %c0_i32, %c0_i32_0 : i32, i32
  }
  func.func @transform_3(%arg0: i32, %arg1: i32) -> (i32, i32) {
    %c0_i32 = arith.constant 0 : i32
    %c0_i32_0 = arith.constant 0 : i32
    return %arg0, %c0_i32 : i32, i32
  }
  func.func @transform_4(%arg0: i32, %arg1: i32) -> (i32, i32) {
    %c0_i32 = arith.constant 0 : i32
    %c0_i32_0 = arith.constant 0 : i32
    %c0_i32_1 = arith.constant 0 : i32
    return %c0_i32, %c0_i32_0 : i32, i32
  }
  func.func @transform_5(%arg0: i32, %arg1: i32) -> (i32, i32, i32) {
    %c0_i32 = arith.constant 0 : i32
    %c0_i32_0 = arith.constant 0 : i32
    return %arg0, %c0_i32, %arg1 : i32, i32, i32
  }
}

</mosaic_0001>

<llo_original>
// kernel: conv2d_channel.3
$region0: #{conv2d_channel.3}
  #allocation0 [shape = 'u32[]', space=smem, size = 0x4, offset = 0x4, fixed_abs, tag = 'smem constant byte address 0x4 - core index']
  #allocation1 [shape = 'u32[72,128]{1,0:T(1,128)}', space=vmem, size = 0x9000, scoped, tag = 'internal scratch']
  %s0 = inlined_call_operand.vmem [shape: f32[2,8,256], index: 0, kind: input, shape index: {}]
  %s1 = inlined_call_operand.vmem [shape: f32[16,8], index: 1, kind: input, shape index: {}]
  %s2 = inlined_call_operand.vmem [shape: f32[16,1], index: 2, kind: input, shape index: {}]
  %s3 = inlined_call_operand.vmem [shape: bf16[2,8,256], index: 3, kind: output, shape index: {0}]
  %s4 = inlined_call_operand.vmem [shape: f32[32,128], index: 4, kind: output, shape index: {1}]
  %s5 = inlined_call_operand.vmem [shape: f32[32,128], index: 5, kind: output, shape index: {2}]
  %6 = xla_tuple %s3, %s4, %s5
  %s7 = sld [smem:[#allocation0]]
  $region65: #{conv2d_channel.3} parent=0
    _
  %s9 = ssub.s32 1, %s7
  %s10 = scalar_select 0, %s9, %s7
  loop: start=0, step=1, limit=4
  $region2: #{conv2d_channel.3} parent=0 // loop_pre_header
    _
  $region3: #{conv2d_channel.3} parent=0 // loop_header
    %s12 = sphi 0, %s16
    %p13 = scmp.ge.s32.totalorder %s12, 4
    %s19 = sphi 0, %s31
    %s20 = sphi 0, %s27
    %s21 = sphi 0, %s19
    %s22 = sphi 0, %s20
    %s23 = sphi 0, %s21
    %s24 = sphi 0, %s22
    %s36 = sphi 0, %s38
    %s39 = sphi 0, %s36
    %s40 = sphi 0, %s39
    %s56 = sphi 0, %s40
    %s60 = sphi 0, %s60
    %s62 = sphi 0, %s60
    %s63 = sphi 0, %s62
    %s77 = sphi 0, %s63
    %s81 = sphi 0, %s81
    %s83 = sphi 0, %s81
    %s84 = sphi 0, %s83
    %s98 = sphi 0, %s84
    %s106 = sphi 0, %s108
    %s109 = sphi 0, %s106
    %s110 = sphi 0, %s109
    %s126 = sphi 0, %s110
    %s132 = sphi 0, %s134
    %s135 = sphi 0, %s132
    %s136 = sphi 0, %s135
    %s152 = sphi 0, %s136
    %s158 = sphi 0, %s160
    %s161 = sphi 0, %s158
    %s162 = sphi 0, %s161
    %s178 = sphi 0, %s162
  $region4: #{conv2d_channel.3} parent=0 // loop_header_branch
    %15 = sbr.rel (%p13) target = $region8
  $region5: #{conv2d_channel.3} parent=0 // loop_body
    %s17 = ssub.s32 %s12, 1
    %s18 = ssub.s32 %s12, 2
    %s25 = sadd.s32 1, %s20
    %p26 = scmp.ge.s32.totalorder %s25, 1
    %s27 = scalar_select %p26, 0, %s25
    %s28 = sadd.s32 1, %s19
    %s29 = scalar_select %p26, %s28, %s19
    %p30 = scmp.ge.s32.totalorder %s29, 2
    %s31 = scalar_select %p30, 0, %s29
    %s32 = ssub.s32 %s19, %s31
    %s33 = ssub.s32 %s20, %s27
    %s34 = sor.u32 %s32, %s33
    %p35 = scmp.eq.s32.totalorder %s34, 0
    %s37 = sadd.s32 %s36, 1
    %s38 = scalar_select %p35, %s36, %s37
    %p41 = pneg %p35
    %p42 = scmp.eq.s32.totalorder %s12, 1
    %p43 = por %p41, %p42
    %p44 = scmp.ne.s32.totalorder %s36, %s39
    %p45 = scmp.eq.s32.totalorder %s12, 0
    %p46 = por %p44, %p45
    %p47 = scmp.ne.s32.totalorder %s36, %s39
    %p48 = scmp.eq.s32.totalorder %s17, 1
    %p49 = por %p47, %p48
    %p50 = scmp.ne.s32.totalorder %s39, %s40
    %p51 = scmp.eq.s32.totalorder %s17, 0
    %p52 = por %p50, %p51
    %p53 = scmp.ne.s32.totalorder %s39, %s40
    %p54 = scmp.eq.s32.totalorder %s18, 1
    %p55 = por %p53, %p54
    %p57 = scmp.ne.s32.totalorder %s40, %s56
    %p58 = scmp.eq.s32.totalorder %s18, 0
    %p59 = por %p57, %p58
    %s61 = sadd.s32 %s60, 1
    %p64 = scmp.eq.s32.totalorder %s12, 1
    %p65 = scmp.ne.s32.totalorder %s60, %s62
    %p66 = scmp.eq.s32.totalorder %s12, 0
    %p67 = por %p65, %p66
    %p68 = scmp.ne.s32.totalorder %s60, %s62
    %p69 = scmp.eq.s32.totalorder %s17, 1
    %p70 = por %p68, %p69
    %p71 = scmp.ne.s32.totalorder %s62, %s63
    %p72 = scmp.eq.s32.totalorder %s17, 0
    %p73 = por %p71, %p72
    %p74 = scmp.ne.s32.totalorder %s62, %s63
    %p75 = scmp.eq.s32.totalorder %s18, 1
    %p76 = por %p74, %p75
    %p78 = scmp.ne.s32.totalorder %s63, %s77
    %p79 = scmp.eq.s32.totalorder %s18, 0
    %p80 = por %p78, %p79
    %s82 = sadd.s32 %s81, 1
    %p85 = scmp.eq.s32.totalorder %s12, 1
    %p86 = scmp.ne.s32.totalorder %s81, %s83
    %p87 = scmp.eq.s32.totalorder %s12, 0
    %p88 = por %p86, %p87
    %p89 = scmp.ne.s32.totalorder %s81, %s83
    %p90 = scmp.eq.s32.totalorder %s17, 1
    %p91 = por %p89, %p90
    %p92 = scmp.ne.s32.totalorder %s83, %s84
    %p93 = scmp.eq.s32.totalorder %s17, 0
    %p94 = por %p92, %p93
    %p95 = scmp.ne.s32.totalorder %s83, %s84
    %p96 = scmp.eq.s32.totalorder %s18, 1
    %p97 = por %p95, %p96
    %p99 = scmp.ne.s32.totalorder %s84, %s98
    %p100 = scmp.eq.s32.totalorder %s18, 0
    %p101 = por %p99, %p100
    %s102 = ssub.s32 %s19, %s31
    %s103 = ssub.s32 %s20, %s27
    %s104 = sor.u32 %s102, %s103
    %p105 = scmp.eq.s32.totalorder %s104, 0
    %s107 = sadd.s32 %s106, 1
    %s108 = scalar_select %p105, %s106, %s107
    %p111 = pneg %p105
    %p112 = scmp.eq.s32.totalorder %s12, 1
    %p113 = por %p111, %p112
    %p114 = scmp.ne.s32.totalorder %s106, %s109
    %p115 = scmp.eq.s32.totalorder %s12, 0
    %p116 = por %p114, %p115
    %p117 = scmp.ne.s32.totalorder %s106, %s109
    %p118 = scmp.eq.s32.totalorder %s17, 1
    %p119 = por %p117, %p118
    %p120 = scmp.ne.s32.totalorder %s109, %s110
    %p121 = scmp.eq.s32.totalorder %s17, 0
    %p122 = por %p120, %p121
    %p123 = scmp.ne.s32.totalorder %s109, %s110
    %p124 = scmp.eq.s32.totalorder %s18, 1
    %p125 = por %p123, %p124
    %p127 = scmp.ne.s32.totalorder %s110, %s126
    %p128 = scmp.eq.s32.totalorder %s18, 0
    %p129 = por %p127, %p128
    %s130 = ssub.s32 %s19, %s31
    %p131 = scmp.eq.s32.totalorder %s130, 0
    %s133 = sadd.s32 %s132, 1
    %s134 = scalar_select %p131, %s132, %s133
    %p137 = pneg %p131
    %p138 = scmp.eq.s32.totalorder %s12, 1
    %p139 = por %p137, %p138
    %p140 = scmp.ne.s32.totalorder %s132, %s135
    %p141 = scmp.eq.s32.totalorder %s12, 0
    %p142 = por %p140, %p141
    %p143 = scmp.ne.s32.totalorder %s132, %s135
    %p144 = scmp.eq.s32.totalorder %s17, 1
    %p145 = por %p143, %p144
    %p146 = scmp.ne.s32.totalorder %s135, %s136
    %p147 = scmp.eq.s32.totalorder %s17, 0
    %p148 = por %p146, %p147
    %p149 = scmp.ne.s32.totalorder %s135, %s136
    %p150 = scmp.eq.s32.totalorder %s18, 1
    %p151 = por %p149, %p150
    %p153 = scmp.ne.s32.totalorder %s136, %s152
    %p154 = scmp.eq.s32.totalorder %s18, 0
    %p155 = por %p153, %p154
    %s156 = ssub.s32 %s19, %s31
    %p157 = scmp.eq.s32.totalorder %s156, 0
    %s159 = sadd.s32 %s158, 1
    %s160 = scalar_select %p157, %s158, %s159
    %p163 = pneg %p157
    %p164 = scmp.eq.s32.totalorder %s12, 1
    %p165 = por %p163, %p164
    %p166 = scmp.ne.s32.totalorder %s158, %s161
    %p167 = scmp.eq.s32.totalorder %s12, 0
    %p168 = por %p166, %p167
    %p169 = scmp.ne.s32.totalorder %s158, %s161
    %p170 = scmp.eq.s32.totalorder %s17, 1
    %p171 = por %p169, %p170
    %p172 = scmp.ne.s32.totalorder %s161, %s162
    %p173 = scmp.eq.s32.totalorder %s17, 0
    %p174 = por %p172, %p173
    %p175 = scmp.ne.s32.totalorder %s161, %s162
    %p176 = scmp.eq.s32.totalorder %s18, 1
    %p177 = por %p175, %p176
    %p179 = scmp.ne.s32.totalorder %s162, %s178
    %p180 = scmp.eq.s32.totalorder %s18, 0
    %p181 = por %p179, %p180
    %p182 = scmp.le.s32.totalorder 1, %s12
    %p183 = scmp.lt.s32.totalorder %s12, 3
    %p184 = pnand %p182, %p183
    %p185 = pneg %p184
    // Predicated region
    $region9: #{conv2d_channel.3} parent=5 // pred_check
      _
    $region10: #{conv2d_channel.3} parent=5 // pred_check_branch
      %187 = sbr.rel (%p184) target = $region12
    $region11: #{conv2d_channel.3} parent=5 // pred_region
      %s188 = ssub.s32 %s12, 1
      // Predicated region
      $region13: #{conv2d_channel.3} parent=11 // pred_check
        %p189 = pneg %p73
      $region14: #{conv2d_channel.3} parent=11 // pred_check_branch
        %191 = sbr.rel (%p189) target = $region16
      $region15: #{conv2d_channel.3} parent=11 // pred_region
        _
      $region16: #{conv2d_channel.3} parent=11 // pred_fallthru
        _
      // Predicated region
      $region17: #{conv2d_channel.3} parent=11 // pred_check
        %p192 = pneg %p94
      $region18: #{conv2d_channel.3} parent=11 // pred_check_branch
        %194 = sbr.rel (%p192) target = $region20
      $region19: #{conv2d_channel.3} parent=11 // pred_region
        _
      $region20: #{conv2d_channel.3} parent=11 // pred_fallthru
        _
    $region12: #{conv2d_channel.3} parent=5 // pred_fallthru
      _
    %p195 = scmp.lt.s32.totalorder %s12, 2
    // Predicated region
    $region21: #{conv2d_channel.3} parent=5 // pred_check
      %p196 = pneg %p195
    $region22: #{conv2d_channel.3} parent=5 // pred_check_branch
      %198 = sbr.rel (%p196) target = $region24
    $region23: #{conv2d_channel.3} parent=5 // pred_region
      // Predicated region
      $region25: #{conv2d_channel.3} parent=23 // pred_check
        %p199 = pneg %p46
      $region26: #{conv2d_channel.3} parent=23 // pred_check_branch
        %201 = sbr.rel (%p199) target = $region28
      $region27: #{conv2d_channel.3} parent=23 // pred_region
        %s202 = smul.u32 2, %s20
        %p203 = scmp.lt.s32.totalorder %s19, 1
        %s204 = scalar_select %p203, %s19, 1
        %p205 = scmp.lt.s32.totalorder %s202, 1
        %s206 = scalar_select %p205, %s202, 1
        %s207 = smul.addr %s204, 2
        %s208 = sadd.s32 %s206, %s207
        %s209 = smul.addr %s208, 8
        %s210 = scalar_lea.vmem %s0, %s209
        %s211 = smul.u32 2, %s20
      $region28: #{conv2d_channel.3} parent=23 // pred_fallthru
        _
    $region24: #{conv2d_channel.3} parent=5 // pred_fallthru
      _
    %p212 = scmp.le.s32.totalorder 1, %s12
    %p213 = scmp.lt.s32.totalorder %s12, 3
    %p214 = pnand %p212, %p213
    %p215 = pneg %p214
    // Predicated region
    $region29: #{conv2d_channel.3} parent=5 // pred_check
      _
    $region30: #{conv2d_channel.3} parent=5 // pred_check_branch
      %217 = sbr.rel (%p214) target = $region32
    $region31: #{conv2d_channel.3} parent=5 // pred_region
      %s218 = ssub.s32 %s12, 1
      %s219 = smul.u32 2, %s22
      %p220 = scmp.lt.s32.totalorder %s21, 1
      %s221 = scalar_select %p220, %s21, 1
      %p222 = scmp.lt.s32.totalorder %s219, 1
      %s223 = scalar_select %p222, %s219, 1
      %s224 = smul.addr %s221, 2
      %s225 = sadd.s32 %s223, %s224
      %s226 = smul.addr %s225, 8
      %s227 = scalar_lea.vmem %s0, %s226
      %p228 = pneg %p52
      %p229 = pneg %p49
      %p230 = pneg %p73
      %p231 = pneg %p70
      %p232 = pneg %p94
      %p233 = pneg %p91
      %p234 = pneg %p122
      %p235 = pneg %p119
      %s236 = smul.u32 2, %s22
      %p237 = scmp.lt.s32.totalorder %s21, 1
      %s238 = scalar_select %p237, %s21, 1
      %p239 = scmp.lt.s32.totalorder %s236, 1
      %s240 = scalar_select %p239, %s236, 1
      %s241 = smul.addr %s238, 2
      %s242 = sadd.s32 %s240, %s241
      %s243 = smul.addr %s242, 4
      %s244 = scalar_lea.vmem %s3, %s243
      %p245 = pneg %p148
      %p246 = pneg %p145
      %s247 = smul.u32 2, %s21
      %p248 = scmp.lt.s32.totalorder %s247, 3
      %s249 = scalar_select %p248, %s247, 3
      %s250 = smul.addr %s249, 8
      %s251 = scalar_lea.vmem %s4, %s250
      %p252 = pneg %p174
      %p253 = pneg %p171
      %s254 = smul.u32 2, %s21
      %p255 = scmp.lt.s32.totalorder %s254, 3
      %s256 = scalar_select %p255, %s254, 3
      %s257 = smul.addr %s256, 8
      %s258 = scalar_lea.vmem %s5, %s257
      %s259 = smul.u32 2, %s22
      %p260 = scmp.lt.s32.totalorder %s21, 1
      %s261 = scalar_select %p260, %s21, 1
      %p262 = scmp.lt.s32.totalorder %s259, 1
      %s263 = scalar_select %p262, %s259, 1
      %s264 = smul.addr %s261, 2
      %s265 = sadd.s32 %s263, %s264
      %s266 = smul.addr %s265, 8
      %s267 = scalar_lea.vmem %s0, %s266
      %s268 = smul.u32 2, %s22
      %s269 = smul.u32 2, %s22
      %p270 = scmp.lt.s32.totalorder %s21, 1
      %s271 = scalar_select %p270, %s21, 1
      %p272 = scmp.lt.s32.totalorder %s269, 1
      %s273 = scalar_select %p272, %s269, 1
      %s274 = smul.addr %s271, 2
      %s275 = sadd.s32 %s273, %s274
      %s276 = smul.addr %s275, 4
      %s277 = scalar_lea.vmem %s3, %s276
      %s278 = smul.u32 2, %s22
      %s279 = smul.u32 2, %s21
      %p280 = scmp.lt.s32.totalorder %s279, 3
      %s281 = scalar_select %p280, %s279, 3
      %s282 = smul.addr %s281, 8
      %s283 = scalar_lea.vmem %s4, %s282
      %s284 = smul.u32 2, %s21
      %s285 = smul.u32 2, %s21
      %p286 = scmp.lt.s32.totalorder %s285, 3
      %s287 = scalar_select %p286, %s285, 3
      %s288 = smul.addr %s287, 8
      %s289 = scalar_lea.vmem %s5, %s288
      %s290 = smul.u32 2, %s21
      %p291 = scmp.eq.s32.totalorder %s22, 0
      // Predicated region
      $region33: #{conv2d_channel.3} parent=31 // pred_check
        %p292 = pneg %p291
      $region34: #{conv2d_channel.3} parent=31 // pred_check_branch
        %294 = sbr.rel (%p292) target = $region36
      $region35: #{conv2d_channel.3} parent=31 // pred_region
        %295 = vst [vmem:[%s283] sm:$0xff] 0.0
        %296 = vst [vmem:[%s283 + $0x8] sm:$0xff] 0.0
        %297 = vst [vmem:[%s289] sm:$0xff] 0.0
        %298 = vst [vmem:[%s289 + $0x8] sm:$0xff] 0.0
      $region36: #{conv2d_channel.3} parent=31 // pred_fallthru
        _
      %v299 = vld [vmem:[%s267] sm:$0xff]
      %v300 = vld [vmem:[%s267 + $0x8] sm:$0xff]
      %v301 = vpack.c.bf16 %v300, %v299
      %302 = vst [vmem:[%s277] sm:$0xff] %v301
      %v303 = vld [vmem:[%s1] sm:$0xff]
      %v304 = vld [vmem:[%s1 + $0x8] sm:$0xff]
      %v305 = vld [vmem:[%s267] sm:$0xff]
      %v306 = vld [vmem:[%s267 + $0x8] sm:$0xff]
      %v307 = vld [vmem:[%s2] sm:$0xff]
      %v308 = vld [vmem:[%s2 + $0x8] sm:$0xff]
      %310 = vset.pattern.permute.xlu0 0
      %311 = vperm.xlu0 %310, %v307
      %v312 = vpop.permute.xlu0 %311
      %315 = vset.pattern.permute.xlu0 0
      %316 = vperm.xlu0 %315, %v308
      %v317 = vpop.permute.xlu0 %316
      %vm319 = vcmask 64512
      %v321 = vsel %vm319, %v303, 0
      %v324 = vsel %vm319, %v304, 0
      %326 = vmatpush.msra.mxu0 0.0
      %327 = vmatpush.msra.mxu0 0.0
      %328 = vmatpush.msra.mxu0 0.0
      %329 = vmatpush.msra.mxu0 0.0
      %330 = vmatpush.msra.mxu0 0.0
      %331 = vmatpush.msra.mxu0 0.0
      %332 = vmatpush.msra.mxu0 0.0
      %333 = vmatpush.msra.mxu0 0.0
      %334 = vmatpush.msra.mxu0 0.0
      %335 = vmatpush.msra.mxu0 0.0
      %336 = vmatpush.msra.mxu0 0.0
      %337 = vmatpush.msra.mxu0 0.0
      %338 = vmatpush.msra.mxu0 0.0
      %339 = vmatpush.msra.mxu0 0.0
      %340 = vmatpush.msra.mxu0 0.0
      %341 = vmatpush.msra.mxu0 %v305
      %342 = vmatmul.f32.gmra.mxu0 %v321
      %v343 = vpop.f32.mrf.mxu0
      %v344 = vadd.f32 %v312, %v343
      %345 = vmatmul.f32.gmra.mxu0 %v324
      %v346 = vpop.f32.mrf.mxu0
      %v347 = vadd.f32 %v317, %v346
      %348 = vdwg.mxu0
      %349 = vmatpush.msra.mxu0 0.0
      %350 = vmatpush.msra.mxu0 0.0
      %351 = vmatpush.msra.mxu0 0.0
      %352 = vmatpush.msra.mxu0 0.0
      %353 = vmatpush.msra.mxu0 0.0
      %354 = vmatpush.msra.mxu0 0.0
      %355 = vmatpush.msra.mxu0 0.0
      %356 = vmatpush.msra.mxu0 0.0
      %357 = vmatpush.msra.mxu0 0.0
      %358 = vmatpush.msra.mxu0 0.0
      %359 = vmatpush.msra.mxu0 0.0
      %360 = vmatpush.msra.mxu0 0.0
      %361 = vmatpush.msra.mxu0 0.0
      %362 = vmatpush.msra.mxu0 0.0
      %363 = vmatpush.msra.mxu0 0.0
      %364 = vmatpush.msra.mxu0 %v306
      %365 = vmatmul.f32.gmra.mxu0 %v321
      %v366 = vpop.f32.mrf.mxu0
      %v367 = vadd.f32 %v312, %v366
      %368 = vmatmul.f32.gmra.mxu0 %v324
      %v369 = vpop.f32.mrf.mxu0
      %v370 = vadd.f32 %v317, %v369
      %371 = vdwg.mxu0
      %v372 = vadd.f32 %v344, 0.0
      %v373 = vadd.f32 %v347, 0.0
      %v374 = vmul.f32 %v344, %v344
      %v375 = vmul.f32 %v347, %v347
      %v376 = vadd.f32 %v374, 0.0
      %v377 = vadd.f32 %v375, 0.0
      %v378 = vadd.f32 %v372, %v367
      %v379 = vadd.f32 %v373, %v370
      %v380 = vmul.f32 %v367, %v367
      %v381 = vmul.f32 %v370, %v370
      %v382 = vadd.f32 %v376, %v380
      %v383 = vadd.f32 %v377, %v381
      %v384 = vld [vmem:[%s283] sm:$0xff]
      %v385 = vld [vmem:[%s283 + $0x8] sm:$0xff]
      %v386 = vadd.f32 %v384, %v378
      %v387 = vadd.f32 %v385, %v379
      %388 = vst [vmem:[%s283] sm:$0xff] %v386
      %389 = vst [vmem:[%s283 + $0x8] sm:$0xff] %v387
      %v390 = vld [vmem:[%s289] sm:$0xff]
      %v391 = vld [vmem:[%s289 + $0x8] sm:$0xff]
      %v392 = vadd.f32 %v390, %v382
      %v393 = vadd.f32 %v391, %v383
      %394 = vst [vmem:[%s289] sm:$0xff] %v392
      %395 = vst [vmem:[%s289 + $0x8] sm:$0xff] %v393
      %s396 = smul.u32 2, %s22
      %p397 = scmp.lt.s32.totalorder %s21, 1
      %s398 = scalar_select %p397, %s21, 1
      %p399 = scmp.lt.s32.totalorder %s396, 1
      %s400 = scalar_select %p399, %s396, 1
      %s401 = smul.addr %s398, 2
      %s402 = sadd.s32 %s400, %s401
      %s403 = smul.addr %s402, 4
      %s404 = scalar_lea.vmem %s3, %s403
      %s405 = smul.u32 2, %s21
      %p406 = scmp.lt.s32.totalorder %s405, 3
      %s407 = scalar_select %p406, %s405, 3
      %s408 = smul.addr %s407, 8
      %s409 = scalar_lea.vmem %s4, %s408
      %s410 = smul.u32 2, %s21
      %p411 = scmp.lt.s32.totalorder %s410, 3
      %s412 = scalar_select %p411, %s410, 3
      %s413 = smul.addr %s412, 8
      %s414 = scalar_lea.vmem %s5, %s413
      // Predicated region
      $region37: #{conv2d_channel.3} parent=31 // pred_check
        %p415 = pneg %p119
      $region38: #{conv2d_channel.3} parent=31 // pred_check_branch
        %417 = sbr.rel (%p415) target = $region40
      $region39: #{conv2d_channel.3} parent=31 // pred_region
        %s418 = smul.u32 2, %s22
      $region40: #{conv2d_channel.3} parent=31 // pred_fallthru
        _
      // Predicated region
      $region41: #{conv2d_channel.3} parent=31 // pred_check
        %p419 = pneg %p145
      $region42: #{conv2d_channel.3} parent=31 // pred_check_branch
        %421 = sbr.rel (%p419) target = $region44
      $region43: #{conv2d_channel.3} parent=31 // pred_region
        %s422 = smul.u32 2, %s21
      $region44: #{conv2d_channel.3} parent=31 // pred_fallthru
        _
      // Predicated region
      $region45: #{conv2d_channel.3} parent=31 // pred_check
        %p423 = pneg %p171
      $region46: #{conv2d_channel.3} parent=31 // pred_check_branch
        %425 = sbr.rel (%p423) target = $region48
      $region47: #{conv2d_channel.3} parent=31 // pred_region
        %s426 = smul.u32 2, %s21
      $region48: #{conv2d_channel.3} parent=31 // pred_fallthru
        _
    $region32: #{conv2d_channel.3} parent=5 // pred_fallthru
      _
    %p427 = scmp.le.s32.totalorder 2, %s12
    // Predicated region
    $region49: #{conv2d_channel.3} parent=5 // pred_check
      %p428 = pneg %p427
    $region50: #{conv2d_channel.3} parent=5 // pred_check_branch
      %430 = sbr.rel (%p428) target = $region52
    $region51: #{conv2d_channel.3} parent=5 // pred_region
      %s431 = ssub.s32 %s12, 2
      // Predicated region
      $region53: #{conv2d_channel.3} parent=51 // pred_check
        %p432 = pneg %p125
      $region54: #{conv2d_channel.3} parent=51 // pred_check_branch
        %434 = sbr.rel (%p432) target = $region56
      $region55: #{conv2d_channel.3} parent=51 // pred_region
        %s435 = smul.u32 2, %s24
        %p436 = scmp.lt.s32.totalorder %s23, 1
        %s437 = scalar_select %p436, %s23, 1
        %p438 = scmp.lt.s32.totalorder %s435, 1
        %s439 = scalar_select %p438, %s435, 1
        %s440 = smul.addr %s437, 2
        %s441 = sadd.s32 %s439, %s440
        %s442 = smul.addr %s441, 4
        %s443 = scalar_lea.vmem %s3, %s442
      $region56: #{conv2d_channel.3} parent=51 // pred_fallthru
        _
      // Predicated region
      $region57: #{conv2d_channel.3} parent=51 // pred_check
        %p444 = pneg %p151
      $region58: #{conv2d_channel.3} parent=51 // pred_check_branch
        %446 = sbr.rel (%p444) target = $region60
      $region59: #{conv2d_channel.3} parent=51 // pred_region
        %s447 = smul.u32 2, %s23
        %p448 = scmp.lt.s32.totalorder %s447, 3
        %s449 = scalar_select %p448, %s447, 3
        %s450 = smul.addr %s449, 8
        %s451 = scalar_lea.vmem %s4, %s450
      $region60: #{conv2d_channel.3} parent=51 // pred_fallthru
        _
      // Predicated region
      $region61: #{conv2d_channel.3} parent=51 // pred_check
        %p452 = pneg %p177
      $region62: #{conv2d_channel.3} parent=51 // pred_check_branch
        %454 = sbr.rel (%p452) target = $region64
      $region63: #{conv2d_channel.3} parent=51 // pred_region
        %s455 = smul.u32 2, %s23
        %p456 = scmp.lt.s32.totalorder %s455, 3
        %s457 = scalar_select %p456, %s455, 3
        %s458 = smul.addr %s457, 8
        %s459 = scalar_lea.vmem %s5, %s458
      $region64: #{conv2d_channel.3} parent=51 // pred_fallthru
        _
    $region52: #{conv2d_channel.3} parent=5 // pred_fallthru
      _
  $region6: #{conv2d_channel.3} parent=0 // loop_footer
    %s16 = sadd.s32 1, %s12
  $region7: #{conv2d_channel.3} parent=0 // loop_footer_branch
    %11 = sbr.rel target = $region3
  $region8: #{conv2d_channel.3} parent=0 // loop_exit
    _

// kernel: conv2d_channel.4
$region0: #{conv2d_channel.4}
  #allocation0 [shape = 'u32[]', space=smem, size = 0x4, offset = 0x4, fixed_abs, tag = 'smem constant byte address 0x4 - core index']
  #allocation1 [shape = 'u32[72,128]{1,0:T(1,128)}', space=vmem, size = 0x9000, scoped, tag = 'internal scratch']
  %s0 = inlined_call_operand.vmem [shape: bf16[2,8,256], index: 0, kind: input, shape index: {}]
  %s1 = inlined_call_operand.vmem [shape: bf16[16,8], index: 1, kind: input, shape index: {}]
  %s2 = inlined_call_operand.vmem [shape: f32[16,1], index: 2, kind: input, shape index: {}]
  %s3 = inlined_call_operand.vmem [shape: f32[32,128], index: 3, kind: output, shape index: {0}]
  %s4 = inlined_call_operand.vmem [shape: f32[32,128], index: 4, kind: output, shape index: {1}]
  %5 = xla_tuple %s3, %s4
  %s6 = sld [smem:[#allocation0]]
  $region57: #{conv2d_channel.4} parent=0
    _
  %s8 = ssub.s32 1, %s6
  %s9 = scalar_select 0, %s8, %s6
  loop: start=0, step=1, limit=4
  $region2: #{conv2d_channel.4} parent=0 // loop_pre_header
    _
  $region3: #{conv2d_channel.4} parent=0 // loop_header
    %s11 = sphi 0, %s15
    %p12 = scmp.ge.s32.totalorder %s11, 4
    %s18 = sphi 0, %s30
    %s19 = sphi 0, %s26
    %s20 = sphi 0, %s18
    %s21 = sphi 0, %s19
    %s22 = sphi 0, %s20
    %s23 = sphi 0, %s21
    %s35 = sphi 0, %s37
    %s38 = sphi 0, %s35
    %s39 = sphi 0, %s38
    %s55 = sphi 0, %s39
    %s59 = sphi 0, %s59
    %s61 = sphi 0, %s59
    %s62 = sphi 0, %s61
    %s76 = sphi 0, %s62
    %s80 = sphi 0, %s80
    %s82 = sphi 0, %s80
    %s83 = sphi 0, %s82
    %s97 = sphi 0, %s83
    %s103 = sphi 0, %s105
    %s106 = sphi 0, %s103
    %s107 = sphi 0, %s106
    %s123 = sphi 0, %s107
    %s129 = sphi 0, %s131
    %s132 = sphi 0, %s129
    %s133 = sphi 0, %s132
    %s149 = sphi 0, %s133
  $region4: #{conv2d_channel.4} parent=0 // loop_header_branch
    %14 = sbr.rel (%p12) target = $region8
  $region5: #{conv2d_channel.4} parent=0 // loop_body
    %s16 = ssub.s32 %s11, 1
    %s17 = ssub.s32 %s11, 2
    %s24 = sadd.s32 1, %s19
    %p25 = scmp.ge.s32.totalorder %s24, 1
    %s26 = scalar_select %p25, 0, %s24
    %s27 = sadd.s32 1, %s18
    %s28 = scalar_select %p25, %s27, %s18
    %p29 = scmp.ge.s32.totalorder %s28, 2
    %s30 = scalar_select %p29, 0, %s28
    %s31 = ssub.s32 %s18, %s30
    %s32 = ssub.s32 %s19, %s26
    %s33 = sor.u32 %s31, %s32
    %p34 = scmp.eq.s32.totalorder %s33, 0
    %s36 = sadd.s32 %s35, 1
    %s37 = scalar_select %p34, %s35, %s36
    %p40 = pneg %p34
    %p41 = scmp.eq.s32.totalorder %s11, 1
    %p42 = por %p40, %p41
    %p43 = scmp.ne.s32.totalorder %s35, %s38
    %p44 = scmp.eq.s32.totalorder %s11, 0
    %p45 = por %p43, %p44
    %p46 = scmp.ne.s32.totalorder %s35, %s38
    %p47 = scmp.eq.s32.totalorder %s16, 1
    %p48 = por %p46, %p47
    %p49 = scmp.ne.s32.totalorder %s38, %s39
    %p50 = scmp.eq.s32.totalorder %s16, 0
    %p51 = por %p49, %p50
    %p52 = scmp.ne.s32.totalorder %s38, %s39
    %p53 = scmp.eq.s32.totalorder %s17, 1
    %p54 = por %p52, %p53
    %p56 = scmp.ne.s32.totalorder %s39, %s55
    %p57 = scmp.eq.s32.totalorder %s17, 0
    %p58 = por %p56, %p57
    %s60 = sadd.s32 %s59, 1
    %p63 = scmp.eq.s32.totalorder %s11, 1
    %p64 = scmp.ne.s32.totalorder %s59, %s61
    %p65 = scmp.eq.s32.totalorder %s11, 0
    %p66 = por %p64, %p65
    %p67 = scmp.ne.s32.totalorder %s59, %s61
    %p68 = scmp.eq.s32.totalorder %s16, 1
    %p69 = por %p67, %p68
    %p70 = scmp.ne.s32.totalorder %s61, %s62
    %p71 = scmp.eq.s32.totalorder %s16, 0
    %p72 = por %p70, %p71
    %p73 = scmp.ne.s32.totalorder %s61, %s62
    %p74 = scmp.eq.s32.totalorder %s17, 1
    %p75 = por %p73, %p74
    %p77 = scmp.ne.s32.totalorder %s62, %s76
    %p78 = scmp.eq.s32.totalorder %s17, 0
    %p79 = por %p77, %p78
    %s81 = sadd.s32 %s80, 1
    %p84 = scmp.eq.s32.totalorder %s11, 1
    %p85 = scmp.ne.s32.totalorder %s80, %s82
    %p86 = scmp.eq.s32.totalorder %s11, 0
    %p87 = por %p85, %p86
    %p88 = scmp.ne.s32.totalorder %s80, %s82
    %p89 = scmp.eq.s32.totalorder %s16, 1
    %p90 = por %p88, %p89
    %p91 = scmp.ne.s32.totalorder %s82, %s83
    %p92 = scmp.eq.s32.totalorder %s16, 0
    %p93 = por %p91, %p92
    %p94 = scmp.ne.s32.totalorder %s82, %s83
    %p95 = scmp.eq.s32.totalorder %s17, 1
    %p96 = por %p94, %p95
    %p98 = scmp.ne.s32.totalorder %s83, %s97
    %p99 = scmp.eq.s32.totalorder %s17, 0
    %p100 = por %p98, %p99
    %s101 = ssub.s32 %s18, %s30
    %p102 = scmp.eq.s32.totalorder %s101, 0
    %s104 = sadd.s32 %s103, 1
    %s105 = scalar_select %p102, %s103, %s104
    %p108 = pneg %p102
    %p109 = scmp.eq.s32.totalorder %s11, 1
    %p110 = por %p108, %p109
    %p111 = scmp.ne.s32.totalorder %s103, %s106
    %p112 = scmp.eq.s32.totalorder %s11, 0
    %p113 = por %p111, %p112
    %p114 = scmp.ne.s32.totalorder %s103, %s106
    %p115 = scmp.eq.s32.totalorder %s16, 1
    %p116 = por %p114, %p115
    %p117 = scmp.ne.s32.totalorder %s106, %s107
    %p118 = scmp.eq.s32.totalorder %s16, 0
    %p119 = por %p117, %p118
    %p120 = scmp.ne.s32.totalorder %s106, %s107
    %p121 = scmp.eq.s32.totalorder %s17, 1
    %p122 = por %p120, %p121
    %p124 = scmp.ne.s32.totalorder %s107, %s123
    %p125 = scmp.eq.s32.totalorder %s17, 0
    %p126 = por %p124, %p125
    %s127 = ssub.s32 %s18, %s30
    %p128 = scmp.eq.s32.totalorder %s127, 0
    %s130 = sadd.s32 %s129, 1
    %s131 = scalar_select %p128, %s129, %s130
    %p134 = pneg %p128
    %p135 = scmp.eq.s32.totalorder %s11, 1
    %p136 = por %p134, %p135
    %p137 = scmp.ne.s32.totalorder %s129, %s132
    %p138 = scmp.eq.s32.totalorder %s11, 0
    %p139 = por %p137, %p138
    %p140 = scmp.ne.s32.totalorder %s129, %s132
    %p141 = scmp.eq.s32.totalorder %s16, 1
    %p142 = por %p140, %p141
    %p143 = scmp.ne.s32.totalorder %s132, %s133
    %p144 = scmp.eq.s32.totalorder %s16, 0
    %p145 = por %p143, %p144
    %p146 = scmp.ne.s32.totalorder %s132, %s133
    %p147 = scmp.eq.s32.totalorder %s17, 1
    %p148 = por %p146, %p147
    %p150 = scmp.ne.s32.totalorder %s133, %s149
    %p151 = scmp.eq.s32.totalorder %s17, 0
    %p152 = por %p150, %p151
    %p153 = scmp.le.s32.totalorder 1, %s11
    %p154 = scmp.lt.s32.totalorder %s11, 3
    %p155 = pnand %p153, %p154
    %p156 = pneg %p155
    // Predicated region
    $region9: #{conv2d_channel.4} parent=5 // pred_check
      _
    $region10: #{conv2d_channel.4} parent=5 // pred_check_branch
      %158 = sbr.rel (%p155) target = $region12
    $region11: #{conv2d_channel.4} parent=5 // pred_region
      %s159 = ssub.s32 %s11, 1
      // Predicated region
      $region13: #{conv2d_channel.4} parent=11 // pred_check
        %p160 = pneg %p72
      $region14: #{conv2d_channel.4} parent=11 // pred_check_branch
        %162 = sbr.rel (%p160) target = $region16
      $region15: #{conv2d_channel.4} parent=11 // pred_region
        _
      $region16: #{conv2d_channel.4} parent=11 // pred_fallthru
        _
      // Predicated region
      $region17: #{conv2d_channel.4} parent=11 // pred_check
        %p163 = pneg %p93
      $region18: #{conv2d_channel.4} parent=11 // pred_check_branch
        %165 = sbr.rel (%p163) target = $region20
      $region19: #{conv2d_channel.4} parent=11 // pred_region
        _
      $region20: #{conv2d_channel.4} parent=11 // pred_fallthru
        _
    $region12: #{conv2d_channel.4} parent=5 // pred_fallthru
      _
    %p166 = scmp.lt.s32.totalorder %s11, 2
    // Predicated region
    $region21: #{conv2d_channel.4} parent=5 // pred_check
      %p167 = pneg %p166
    $region22: #{conv2d_channel.4} parent=5 // pred_check_branch
      %169 = sbr.rel (%p167) target = $region24
    $region23: #{conv2d_channel.4} parent=5 // pred_region
      // Predicated region
      $region25: #{conv2d_channel.4} parent=23 // pred_check
        %p170 = pneg %p45
      $region26: #{conv2d_channel.4} parent=23 // pred_check_branch
        %172 = sbr.rel (%p170) target = $region28
      $region27: #{conv2d_channel.4} parent=23 // pred_region
        %s173 = smul.u32 2, %s19
        %p174 = scmp.lt.s32.totalorder %s18, 1
        %s175 = scalar_select %p174, %s18, 1
        %p176 = scmp.lt.s32.totalorder %s173, 1
        %s177 = scalar_select %p176, %s173, 1
        %s178 = smul.addr %s175, 2
        %s179 = sadd.s32 %s177, %s178
        %s180 = smul.addr %s179, 4
        %s181 = scalar_lea.vmem %s0, %s180
        %s182 = smul.u32 2, %s19
      $region28: #{conv2d_channel.4} parent=23 // pred_fallthru
        _
    $region24: #{conv2d_channel.4} parent=5 // pred_fallthru
      _
    %p183 = scmp.le.s32.totalorder 1, %s11
    %p184 = scmp.lt.s32.totalorder %s11, 3
    %p185 = pnand %p183, %p184
    %p186 = pneg %p185
    // Predicated region
    $region29: #{conv2d_channel.4} parent=5 // pred_check
      _
    $region30: #{conv2d_channel.4} parent=5 // pred_check_branch
      %188 = sbr.rel (%p185) target = $region32
    $region31: #{conv2d_channel.4} parent=5 // pred_region
      %s189 = ssub.s32 %s11, 1
      %s190 = smul.u32 2, %s21
      %p191 = scmp.lt.s32.totalorder %s20, 1
      %s192 = scalar_select %p191, %s20, 1
      %p193 = scmp.lt.s32.totalorder %s190, 1
      %s194 = scalar_select %p193, %s190, 1
      %s195 = smul.addr %s192, 2
      %s196 = sadd.s32 %s194, %s195
      %s197 = smul.addr %s196, 4
      %s198 = scalar_lea.vmem %s0, %s197
      %p199 = pneg %p51
      %p200 = pneg %p48
      %p201 = pneg %p72
      %p202 = pneg %p69
      %p203 = pneg %p93
      %p204 = pneg %p90
      %p205 = pneg %p119
      %p206 = pneg %p116
      %s207 = smul.u32 2, %s20
      %p208 = scmp.lt.s32.totalorder %s207, 3
      %s209 = scalar_select %p208, %s207, 3
      %s210 = smul.addr %s209, 8
      %s211 = scalar_lea.vmem %s3, %s210
      %p212 = pneg %p145
      %p213 = pneg %p142
      %s214 = smul.u32 2, %s20
      %p215 = scmp.lt.s32.totalorder %s214, 3
      %s216 = scalar_select %p215, %s214, 3
      %s217 = smul.addr %s216, 8
      %s218 = scalar_lea.vmem %s4, %s217
      %s219 = smul.u32 2, %s21
      %p220 = scmp.lt.s32.totalorder %s20, 1
      %s221 = scalar_select %p220, %s20, 1
      %p222 = scmp.lt.s32.totalorder %s219, 1
      %s223 = scalar_select %p222, %s219, 1
      %s224 = smul.addr %s221, 2
      %s225 = sadd.s32 %s223, %s224
      %s226 = smul.addr %s225, 4
      %s227 = scalar_lea.vmem %s0, %s226
      %s228 = smul.u32 2, %s21
      %s229 = smul.u32 2, %s20
      %p230 = scmp.lt.s32.totalorder %s229, 3
      %s231 = scalar_select %p230, %s229, 3
      %s232 = smul.addr %s231, 8
      %s233 = scalar_lea.vmem %s3, %s232
      %s234 = smul.u32 2, %s20
      %s235 = smul.u32 2, %s20
      %p236 = scmp.lt.s32.totalorder %s235, 3
      %s237 = scalar_select %p236, %s235, 3
      %s238 = smul.addr %s237, 8
      %s239 = scalar_lea.vmem %s4, %s238
      %s240 = smul.u32 2, %s20
      %p242 = scmp.eq.s32.totalorder %s21, 0
      // Predicated region
      $region33: #{conv2d_channel.4} parent=31 // pred_check
        %p243 = pneg %p242
      $region34: #{conv2d_channel.4} parent=31 // pred_check_branch
        %245 = sbr.rel (%p243) target = $region36
      $region35: #{conv2d_channel.4} parent=31 // pred_region
        %246 = vst [vmem:[%s233] sm:$0xff] 0.0
        %247 = vst [vmem:[%s233 + $0x8] sm:$0xff] 0.0
        %248 = vst [vmem:[%s239] sm:$0xff] 0.0
        %249 = vst [vmem:[%s239 + $0x8] sm:$0xff] 0.0
      $region36: #{conv2d_channel.4} parent=31 // pred_fallthru
        _
      %v250 = vld [vmem:[%s1] sm:$0xf]
      %v251 = vld [vmem:[%s1 + $0x4] sm:$0xf]
      %v252 = vld [vmem:[%s227] sm:$0xff]
      %v253 = vld [vmem:[%s2] sm:$0xff]
      %v254 = vld [vmem:[%s2 + $0x8] sm:$0xff]
      %256 = vset.pattern.permute.xlu0 0
      %257 = vperm.xlu0 %256, %v253
      %v258 = vpop.permute.xlu0 %257
      %261 = vset.pattern.permute.xlu0 0
      %262 = vperm.xlu0 %261, %v254
      %v263 = vpop.permute.xlu0 %262
      %v267 = vunpack.c.l.b16 %v250
      %v268 = vunpack.c.l.b16 %v251
      %v269 = vpack.c.b16 %v268, %v267
      %v271 = vunpack.c.l.b16 %v252
      %v272 = vunpack.c.h.b16 %v252
      %v273 = vpack.c.b16 %v271, %v271
      %v274 = vpack.c.b16 %v272, %v272
      %vm275 = vcmask 64512
      %v277 = vsel %vm275, %v269, 0
      %vm279 = vcmask 1043456
      %v281 = vsel %vm279, %v273, 0
      %v284 = vsel %vm279, %v274, 0
      %286 = vmatpush.bf16.msra.mxu0 0
      %287 = vmatpush.bf16.msra.mxu0 0
      %288 = vmatpush.bf16.msra.mxu0 0
      %289 = vmatpush.bf16.msra.mxu0 0
      %290 = vmatpush.bf16.msra.mxu0 0
      %291 = vmatpush.bf16.msra.mxu0 0
      %292 = vmatpush.bf16.msra.mxu0 0
      %293 = vmatpush.bf16.msra.mxu0 %v281
      %294 = vmatmul.bf16.gmra.mxu0 %v277
      %v295 = vpop.f32.mrf.mxu0
      %v296 = vadd.f32 %v258, %v295
      %v297 = vpop.f32.mrf.mxu0
      %v298 = vadd.f32 %v263, %v297
      %299 = vdwg.mxu0
      %300 = vmatpush.bf16.msra.mxu0 0
      %301 = vmatpush.bf16.msra.mxu0 0
      %302 = vmatpush.bf16.msra.mxu0 0
      %303 = vmatpush.bf16.msra.mxu0 0
      %304 = vmatpush.bf16.msra.mxu0 0
      %305 = vmatpush.bf16.msra.mxu0 0
      %306 = vmatpush.bf16.msra.mxu0 0
      %307 = vmatpush.bf16.msra.mxu0 %v284
      %308 = vmatmul.bf16.gmra.mxu0 %v277
      %v309 = vpop.f32.mrf.mxu0
      %v310 = vadd.f32 %v258, %v309
      %v311 = vpop.f32.mrf.mxu0
      %v312 = vadd.f32 %v263, %v311
      %313 = vdwg.mxu0
      %v314 = vmul.f32 %v296, 0.01
      %v315 = vmul.f32 %v310, 0.01
      %v316 = vmul.f32 %v298, 0.01
      %v317 = vmul.f32 %v312, 0.01
      %v318 = vmax.f32 %v296, %v314
      %v319 = vmax.f32 %v310, %v315
      %v320 = vmax.f32 %v298, %v316
      %v321 = vmax.f32 %v312, %v317
      %v322 = vadd.f32 %v318, 0.0
      %v323 = vadd.f32 %v320, 0.0
      %v324 = vmul.f32 %v318, %v318
      %v325 = vmul.f32 %v320, %v320
      %v326 = vadd.f32 %v324, 0.0
      %v327 = vadd.f32 %v325, 0.0
      %v328 = vadd.f32 %v322, %v319
      %v329 = vadd.f32 %v323, %v321
      %v330 = vmul.f32 %v319, %v319
      %v331 = vmul.f32 %v321, %v321
      %v332 = vadd.f32 %v326, %v330
      %v333 = vadd.f32 %v327, %v331
      %v334 = vld [vmem:[%s233] sm:$0xff]
      %v335 = vld [vmem:[%s233 + $0x8] sm:$0xff]
      %v336 = vadd.f32 %v334, %v328
      %v337 = vadd.f32 %v335, %v329
      %338 = vst [vmem:[%s233] sm:$0xff] %v336
      %339 = vst [vmem:[%s233 + $0x8] sm:$0xff] %v337
      %v340 = vld [vmem:[%s239] sm:$0xff]
      %v341 = vld [vmem:[%s239 + $0x8] sm:$0xff]
      %v342 = vadd.f32 %v340, %v332
      %v343 = vadd.f32 %v341, %v333
      %344 = vst [vmem:[%s239] sm:$0xff] %v342
      %345 = vst [vmem:[%s239 + $0x8] sm:$0xff] %v343
      %s346 = smul.u32 2, %s20
      %p347 = scmp.lt.s32.totalorder %s346, 3
      %s348 = scalar_select %p347, %s346, 3
      %s349 = smul.addr %s348, 8
      %s350 = scalar_lea.vmem %s3, %s349
      %s351 = smul.u32 2, %s20
      %p352 = scmp.lt.s32.totalorder %s351, 3
      %s353 = scalar_select %p352, %s351, 3
      %s354 = smul.addr %s353, 8
      %s355 = scalar_lea.vmem %s4, %s354
      // Predicated region
      $region37: #{conv2d_channel.4} parent=31 // pred_check
        %p356 = pneg %p116
      $region38: #{conv2d_channel.4} parent=31 // pred_check_branch
        %358 = sbr.rel (%p356) target = $region40
      $region39: #{conv2d_channel.4} parent=31 // pred_region
        %s359 = smul.u32 2, %s20
      $region40: #{conv2d_channel.4} parent=31 // pred_fallthru
        _
      // Predicated region
      $region41: #{conv2d_channel.4} parent=31 // pred_check
        %p360 = pneg %p142
      $region42: #{conv2d_channel.4} parent=31 // pred_check_branch
        %362 = sbr.rel (%p360) target = $region44
      $region43: #{conv2d_channel.4} parent=31 // pred_region
        %s363 = smul.u32 2, %s20
      $region44: #{conv2d_channel.4} parent=31 // pred_fallthru
        _
    $region32: #{conv2d_channel.4} parent=5 // pred_fallthru
      _
    %p364 = scmp.le.s32.totalorder 2, %s11
    // Predicated region
    $region45: #{conv2d_channel.4} parent=5 // pred_check
      %p365 = pneg %p364
    $region46: #{conv2d_channel.4} parent=5 // pred_check_branch
      %367 = sbr.rel (%p365) target = $region48
    $region47: #{conv2d_channel.4} parent=5 // pred_region
      %s368 = ssub.s32 %s11, 2
      // Predicated region
      $region49: #{conv2d_channel.4} parent=47 // pred_check
        %p369 = pneg %p122
      $region50: #{conv2d_channel.4} parent=47 // pred_check_branch
        %371 = sbr.rel (%p369) target = $region52
      $region51: #{conv2d_channel.4} parent=47 // pred_region
        %s372 = smul.u32 2, %s22
        %p373 = scmp.lt.s32.totalorder %s372, 3
        %s374 = scalar_select %p373, %s372, 3
        %s375 = smul.addr %s374, 8
        %s376 = scalar_lea.vmem %s3, %s375
      $region52: #{conv2d_channel.4} parent=47 // pred_fallthru
        _
      // Predicated region
      $region53: #{conv2d_channel.4} parent=47 // pred_check
        %p377 = pneg %p148
      $region54: #{conv2d_channel.4} parent=47 // pred_check_branch
        %379 = sbr.rel (%p377) target = $region56
      $region55: #{conv2d_channel.4} parent=47 // pred_region
        %s380 = smul.u32 2, %s22
        %p381 = scmp.lt.s32.totalorder %s380, 3
        %s382 = scalar_select %p381, %s380, 3
        %s383 = smul.addr %s382, 8
        %s384 = scalar_lea.vmem %s4, %s383
      $region56: #{conv2d_channel.4} parent=47 // pred_fallthru
        _
    $region48: #{conv2d_channel.4} parent=5 // pred_fallthru
      _
  $region6: #{conv2d_channel.4} parent=0 // loop_footer
    %s15 = sadd.s32 1, %s11
  $region7: #{conv2d_channel.4} parent=0 // loop_footer_branch
    %10 = sbr.rel target = $region3
  $region8: #{conv2d_channel.4} parent=0 // loop_exit
    _

// kernel: conv2d_channel.5
$region0: #{conv2d_channel.5}
  #allocation0 [shape = 'u32[]', space=smem, size = 0x4, offset = 0x4, fixed_abs, tag = 'smem constant byte address 0x4 - core index']
  #allocation1 [shape = 'u32[72,128]{1,0:T(1,128)}', space=vmem, size = 0x9000, scoped, tag = 'internal scratch']
  %s0 = inlined_call_operand.vmem [shape: bf16[2,8,256], index: 0, kind: input, shape index: {}]
  %s1 = inlined_call_operand.vmem [shape: bf16[16,8], index: 1, kind: input, shape index: {}]
  %s2 = inlined_call_operand.vmem [shape: f32[16,1], index: 2, kind: input, shape index: {}]
  %s3 = inlined_call_operand.vmem [shape: f32[32,1], index: 3, kind: input, shape index: {}]
  %s4 = inlined_call_operand.vmem [shape: f32[16,1], index: 4, kind: input, shape index: {}]
  %s5 = inlined_call_operand.vmem [shape: bf16[2,16,256], index: 5, kind: output, shape index: {}]
  %s6 = sld [smem:[#allocation0]]
  $region53: #{conv2d_channel.5} parent=0
    _
  %s8 = ssub.s32 1, %s6
  %s9 = scalar_select 0, %s8, %s6
  loop: start=0, step=1, limit=4
  $region2: #{conv2d_channel.5} parent=0 // loop_pre_header
    _
  $region3: #{conv2d_channel.5} parent=0 // loop_header
    %s11 = sphi 0, %s15
    %p12 = scmp.ge.s32.totalorder %s11, 4
    %s18 = sphi 0, %s30
    %s19 = sphi 0, %s26
    %s20 = sphi 0, %s18
    %s21 = sphi 0, %s19
    %s22 = sphi 0, %s20
    %s23 = sphi 0, %s21
    %s35 = sphi 0, %s37
    %s38 = sphi 0, %s35
    %s39 = sphi 0, %s38
    %s55 = sphi 0, %s39
    %s59 = sphi 0, %s59
    %s61 = sphi 0, %s59
    %s62 = sphi 0, %s61
    %s76 = sphi 0, %s62
    %s80 = sphi 0, %s80
    %s82 = sphi 0, %s80
    %s83 = sphi 0, %s82
    %s97 = sphi 0, %s83
    %s103 = sphi 0, %s105
    %s106 = sphi 0, %s103
    %s107 = sphi 0, %s106
    %s123 = sphi 0, %s107
    %s127 = sphi 0, %s127
    %s129 = sphi 0, %s127
    %s130 = sphi 0, %s129
    %s144 = sphi 0, %s130
    %s152 = sphi 0, %s154
    %s155 = sphi 0, %s152
    %s156 = sphi 0, %s155
    %s172 = sphi 0, %s156
  $region4: #{conv2d_channel.5} parent=0 // loop_header_branch
    %14 = sbr.rel (%p12) target = $region8
  $region5: #{conv2d_channel.5} parent=0 // loop_body
    %s16 = ssub.s32 %s11, 1
    %s17 = ssub.s32 %s11, 2
    %s24 = sadd.s32 1, %s19
    %p25 = scmp.ge.s32.totalorder %s24, 1
    %s26 = scalar_select %p25, 0, %s24
    %s27 = sadd.s32 1, %s18
    %s28 = scalar_select %p25, %s27, %s18
    %p29 = scmp.ge.s32.totalorder %s28, 2
    %s30 = scalar_select %p29, 0, %s28
    %s31 = ssub.s32 %s18, %s30
    %s32 = ssub.s32 %s19, %s26
    %s33 = sor.u32 %s31, %s32
    %p34 = scmp.eq.s32.totalorder %s33, 0
    %s36 = sadd.s32 %s35, 1
    %s37 = scalar_select %p34, %s35, %s36
    %p40 = pneg %p34
    %p41 = scmp.eq.s32.totalorder %s11, 1
    %p42 = por %p40, %p41
    %p43 = scmp.ne.s32.totalorder %s35, %s38
    %p44 = scmp.eq.s32.totalorder %s11, 0
    %p45 = por %p43, %p44
    %p46 = scmp.ne.s32.totalorder %s35, %s38
    %p47 = scmp.eq.s32.totalorder %s16, 1
    %p48 = por %p46, %p47
    %p49 = scmp.ne.s32.totalorder %s38, %s39
    %p50 = scmp.eq.s32.totalorder %s16, 0
    %p51 = por %p49, %p50
    %p52 = scmp.ne.s32.totalorder %s38, %s39
    %p53 = scmp.eq.s32.totalorder %s17, 1
    %p54 = por %p52, %p53
    %p56 = scmp.ne.s32.totalorder %s39, %s55
    %p57 = scmp.eq.s32.totalorder %s17, 0
    %p58 = por %p56, %p57
    %s60 = sadd.s32 %s59, 1
    %p63 = scmp.eq.s32.totalorder %s11, 1
    %p64 = scmp.ne.s32.totalorder %s59, %s61
    %p65 = scmp.eq.s32.totalorder %s11, 0
    %p66 = por %p64, %p65
    %p67 = scmp.ne.s32.totalorder %s59, %s61
    %p68 = scmp.eq.s32.totalorder %s16, 1
    %p69 = por %p67, %p68
    %p70 = scmp.ne.s32.totalorder %s61, %s62
    %p71 = scmp.eq.s32.totalorder %s16, 0
    %p72 = por %p70, %p71
    %p73 = scmp.ne.s32.totalorder %s61, %s62
    %p74 = scmp.eq.s32.totalorder %s17, 1
    %p75 = por %p73, %p74
    %p77 = scmp.ne.s32.totalorder %s62, %s76
    %p78 = scmp.eq.s32.totalorder %s17, 0
    %p79 = por %p77, %p78
    %s81 = sadd.s32 %s80, 1
    %p84 = scmp.eq.s32.totalorder %s11, 1
    %p85 = scmp.ne.s32.totalorder %s80, %s82
    %p86 = scmp.eq.s32.totalorder %s11, 0
    %p87 = por %p85, %p86
    %p88 = scmp.ne.s32.totalorder %s80, %s82
    %p89 = scmp.eq.s32.totalorder %s16, 1
    %p90 = por %p88, %p89
    %p91 = scmp.ne.s32.totalorder %s82, %s83
    %p92 = scmp.eq.s32.totalorder %s16, 0
    %p93 = por %p91, %p92
    %p94 = scmp.ne.s32.totalorder %s82, %s83
    %p95 = scmp.eq.s32.totalorder %s17, 1
    %p96 = por %p94, %p95
    %p98 = scmp.ne.s32.totalorder %s83, %s97
    %p99 = scmp.eq.s32.totalorder %s17, 0
    %p100 = por %p98, %p99
    %s101 = ssub.s32 %s18, %s30
    %p102 = scmp.eq.s32.totalorder %s101, 0
    %s104 = sadd.s32 %s103, 1
    %s105 = scalar_select %p102, %s103, %s104
    %p108 = pneg %p102
    %p109 = scmp.eq.s32.totalorder %s11, 1
    %p110 = por %p108, %p109
    %p111 = scmp.ne.s32.totalorder %s103, %s106
    %p112 = scmp.eq.s32.totalorder %s11, 0
    %p113 = por %p111, %p112
    %p114 = scmp.ne.s32.totalorder %s103, %s106
    %p115 = scmp.eq.s32.totalorder %s16, 1
    %p116 = por %p114, %p115
    %p117 = scmp.ne.s32.totalorder %s106, %s107
    %p118 = scmp.eq.s32.totalorder %s16, 0
    %p119 = por %p117, %p118
    %p120 = scmp.ne.s32.totalorder %s106, %s107
    %p121 = scmp.eq.s32.totalorder %s17, 1
    %p122 = por %p120, %p121
    %p124 = scmp.ne.s32.totalorder %s107, %s123
    %p125 = scmp.eq.s32.totalorder %s17, 0
    %p126 = por %p124, %p125
    %s128 = sadd.s32 %s127, 1
    %p131 = scmp.eq.s32.totalorder %s11, 1
    %p132 = scmp.ne.s32.totalorder %s127, %s129
    %p133 = scmp.eq.s32.totalorder %s11, 0
    %p134 = por %p132, %p133
    %p135 = scmp.ne.s32.totalorder %s127, %s129
    %p136 = scmp.eq.s32.totalorder %s16, 1
    %p137 = por %p135, %p136
    %p138 = scmp.ne.s32.totalorder %s129, %s130
    %p139 = scmp.eq.s32.totalorder %s16, 0
    %p140 = por %p138, %p139
    %p141 = scmp.ne.s32.totalorder %s129, %s130
    %p142 = scmp.eq.s32.totalorder %s17, 1
    %p143 = por %p141, %p142
    %p145 = scmp.ne.s32.totalorder %s130, %s144
    %p146 = scmp.eq.s32.totalorder %s17, 0
    %p147 = por %p145, %p146
    %s148 = ssub.s32 %s18, %s30
    %s149 = ssub.s32 %s19, %s26
    %s150 = sor.u32 %s148, %s149
    %p151 = scmp.eq.s32.totalorder %s150, 0
    %s153 = sadd.s32 %s152, 1
    %s154 = scalar_select %p151, %s152, %s153
    %p157 = pneg %p151
    %p158 = scmp.eq.s32.totalorder %s11, 1
    %p159 = por %p157, %p158
    %p160 = scmp.ne.s32.totalorder %s152, %s155
    %p161 = scmp.eq.s32.totalorder %s11, 0
    %p162 = por %p160, %p161
    %p163 = scmp.ne.s32.totalorder %s152, %s155
    %p164 = scmp.eq.s32.totalorder %s16, 1
    %p165 = por %p163, %p164
    %p166 = scmp.ne.s32.totalorder %s155, %s156
    %p167 = scmp.eq.s32.totalorder %s16, 0
    %p168 = por %p166, %p167
    %p169 = scmp.ne.s32.totalorder %s155, %s156
    %p170 = scmp.eq.s32.totalorder %s17, 1
    %p171 = por %p169, %p170
    %p173 = scmp.ne.s32.totalorder %s156, %s172
    %p174 = scmp.eq.s32.totalorder %s17, 0
    %p175 = por %p173, %p174
    %p176 = scmp.le.s32.totalorder 1, %s11
    %p177 = scmp.lt.s32.totalorder %s11, 3
    %p178 = pnand %p176, %p177
    %p179 = pneg %p178
    // Predicated region
    $region9: #{conv2d_channel.5} parent=5 // pred_check
      _
    $region10: #{conv2d_channel.5} parent=5 // pred_check_branch
      %181 = sbr.rel (%p178) target = $region12
    $region11: #{conv2d_channel.5} parent=5 // pred_region
      %s182 = ssub.s32 %s11, 1
      // Predicated region
      $region13: #{conv2d_channel.5} parent=11 // pred_check
        %p183 = pneg %p72
      $region14: #{conv2d_channel.5} parent=11 // pred_check_branch
        %185 = sbr.rel (%p183) target = $region16
      $region15: #{conv2d_channel.5} parent=11 // pred_region
        _
      $region16: #{conv2d_channel.5} parent=11 // pred_fallthru
        _
      // Predicated region
      $region17: #{conv2d_channel.5} parent=11 // pred_check
        %p186 = pneg %p93
      $region18: #{conv2d_channel.5} parent=11 // pred_check_branch
        %188 = sbr.rel (%p186) target = $region20
      $region19: #{conv2d_channel.5} parent=11 // pred_region
        _
      $region20: #{conv2d_channel.5} parent=11 // pred_fallthru
        _
      // Predicated region
      $region21: #{conv2d_channel.5} parent=11 // pred_check
        %p189 = pneg %p140
      $region22: #{conv2d_channel.5} parent=11 // pred_check_branch
        %191 = sbr.rel (%p189) target = $region24
      $region23: #{conv2d_channel.5} parent=11 // pred_region
        _
      $region24: #{conv2d_channel.5} parent=11 // pred_fallthru
        _
    $region12: #{conv2d_channel.5} parent=5 // pred_fallthru
      _
    %p192 = scmp.lt.s32.totalorder %s11, 2
    // Predicated region
    $region25: #{conv2d_channel.5} parent=5 // pred_check
      %p193 = pneg %p192
    $region26: #{conv2d_channel.5} parent=5 // pred_check_branch
      %195 = sbr.rel (%p193) target = $region28
    $region27: #{conv2d_channel.5} parent=5 // pred_region
      // Predicated region
      $region29: #{conv2d_channel.5} parent=27 // pred_check
        %p196 = pneg %p45
      $region30: #{conv2d_channel.5} parent=27 // pred_check_branch
        %198 = sbr.rel (%p196) target = $region32
      $region31: #{conv2d_channel.5} parent=27 // pred_region
        %s199 = smul.u32 2, %s19
        %p200 = scmp.lt.s32.totalorder %s18, 1
        %s201 = scalar_select %p200, %s18, 1
        %p202 = scmp.lt.s32.totalorder %s199, 1
        %s203 = scalar_select %p202, %s199, 1
        %s204 = smul.addr %s201, 2
        %s205 = sadd.s32 %s203, %s204
        %s206 = smul.addr %s205, 4
        %s207 = scalar_lea.vmem %s0, %s206
        %s208 = smul.u32 2, %s19
      $region32: #{conv2d_channel.5} parent=27 // pred_fallthru
        _
      // Predicated region
      $region33: #{conv2d_channel.5} parent=27 // pred_check
        %p209 = pneg %p113
      $region34: #{conv2d_channel.5} parent=27 // pred_check_branch
        %211 = sbr.rel (%p209) target = $region36
      $region35: #{conv2d_channel.5} parent=27 // pred_region
        %s212 = smul.u32 2, %s18
        %p213 = scmp.lt.s32.totalorder %s212, 3
        %s214 = scalar_select %p213, %s212, 3
        %s215 = smul.addr %s214, 8
        %s216 = scalar_lea.vmem %s3, %s215
        %s217 = smul.u32 2, %s18
      $region36: #{conv2d_channel.5} parent=27 // pred_fallthru
        _
    $region28: #{conv2d_channel.5} parent=5 // pred_fallthru
      _
    %p218 = scmp.le.s32.totalorder 1, %s11
    %p219 = scmp.lt.s32.totalorder %s11, 3
    %p220 = pnand %p218, %p219
    %p221 = pneg %p220
    // Predicated region
    $region37: #{conv2d_channel.5} parent=5 // pred_check
      _
    $region38: #{conv2d_channel.5} parent=5 // pred_check_branch
      %223 = sbr.rel (%p220) target = $region40
    $region39: #{conv2d_channel.5} parent=5 // pred_region
      %s224 = ssub.s32 %s11, 1
      %s225 = smul.u32 2, %s21
      %p226 = scmp.lt.s32.totalorder %s20, 1
      %s227 = scalar_select %p226, %s20, 1
      %p228 = scmp.lt.s32.totalorder %s225, 1
      %s229 = scalar_select %p228, %s225, 1
      %s230 = smul.addr %s227, 2
      %s231 = sadd.s32 %s229, %s230
      %s232 = smul.addr %s231, 4
      %s233 = scalar_lea.vmem %s0, %s232
      %p234 = pneg %p51
      %p235 = pneg %p48
      %p236 = pneg %p72
      %p237 = pneg %p69
      %p238 = pneg %p93
      %p239 = pneg %p90
      %s240 = smul.u32 2, %s20
      %p241 = scmp.lt.s32.totalorder %s240, 3
      %s242 = scalar_select %p241, %s240, 3
      %s243 = smul.addr %s242, 8
      %s244 = scalar_lea.vmem %s3, %s243
      %p245 = pneg %p119
      %p246 = pneg %p116
      %p247 = pneg %p140
      %p248 = pneg %p137
      %p249 = pneg %p168
      %p250 = pneg %p165
      %s251 = smul.u32 2, %s21
      %p252 = scmp.lt.s32.totalorder %s20, 1
      %s253 = scalar_select %p252, %s20, 1
      %p254 = scmp.lt.s32.totalorder %s251, 1
      %s255 = scalar_select %p254, %s251, 1
      %s256 = smul.addr %s253, 4
      %s257 = sadd.s32 %s255, %s256
      %s258 = smul.addr %s257, 4
      %s259 = scalar_lea.vmem %s5, %s258
      %s260 = smul.u32 2, %s21
      %p261 = scmp.lt.s32.totalorder %s20, 1
      %s262 = scalar_select %p261, %s20, 1
      %p263 = scmp.lt.s32.totalorder %s260, 1
      %s264 = scalar_select %p263, %s260, 1
      %s265 = smul.addr %s262, 2
      %s266 = sadd.s32 %s264, %s265
      %s267 = smul.addr %s266, 4
      %s268 = scalar_lea.vmem %s0, %s267
      %s269 = smul.u32 2, %s21
      %s270 = smul.u32 2, %s20
      %p271 = scmp.lt.s32.totalorder %s270, 3
      %s272 = scalar_select %p271, %s270, 3
      %s273 = smul.addr %s272, 8
      %s274 = scalar_lea.vmem %s3, %s273
      %s275 = smul.u32 2, %s20
      %s276 = smul.u32 2, %s21
      %p277 = scmp.lt.s32.totalorder %s20, 1
      %s278 = scalar_select %p277, %s20, 1
      %p279 = scmp.lt.s32.totalorder %s276, 1
      %s280 = scalar_select %p279, %s276, 1
      %s281 = smul.addr %s278, 4
      %s282 = sadd.s32 %s280, %s281
      %s283 = smul.addr %s282, 4
      %s284 = scalar_lea.vmem %s5, %s283
      %s285 = smul.u32 2, %s21
      %v287 = vld [vmem:[%s1] sm:$0xf]
      %v288 = vld [vmem:[%s1 + $0x4] sm:$0xf]
      %v289 = vld [vmem:[%s268] sm:$0xff]
      %v290 = vld [vmem:[%s2] sm:$0xff]
      %v291 = vld [vmem:[%s2 + $0x8] sm:$0xff]
      %293 = vset.pattern.permute.xlu0 0
      %294 = vperm.xlu0 %293, %v290
      %v295 = vpop.permute.xlu0 %294
      %298 = vset.pattern.permute.xlu0 0
      %299 = vperm.xlu0 %298, %v291
      %v300 = vpop.permute.xlu0 %299
      %v304 = vunpack.c.l.b16 %v287
      %v305 = vunpack.c.l.b16 %v288
      %v306 = vpack.c.b16 %v305, %v304
      %v308 = vunpack.c.l.b16 %v289
      %v309 = vunpack.c.h.b16 %v289
      %v310 = vpack.c.b16 %v308, %v308
      %v311 = vpack.c.b16 %v309, %v309
      %vm312 = vcmask 64512
      %v314 = vsel %vm312, %v306, 0
      %vm316 = vcmask 1043456
      %v318 = vsel %vm316, %v310, 0
      %v321 = vsel %vm316, %v311, 0
      %323 = vmatpush.bf16.msra.mxu0 0
      %324 = vmatpush.bf16.msra.mxu0 0
      %325 = vmatpush.bf16.msra.mxu0 0
      %326 = vmatpush.bf16.msra.mxu0 0
      %327 = vmatpush.bf16.msra.mxu0 0
      %328 = vmatpush.bf16.msra.mxu0 0
      %329 = vmatpush.bf16.msra.mxu0 0
      %330 = vmatpush.bf16.msra.mxu0 %v318
      %331 = vmatmul.bf16.gmra.mxu0 %v314
      %v332 = vpop.f32.mrf.mxu0
      %v333 = vadd.f32 %v295, %v332
      %v334 = vpop.f32.mrf.mxu0
      %v335 = vadd.f32 %v300, %v334
      %336 = vdwg.mxu0
      %337 = vmatpush.bf16.msra.mxu0 0
      %338 = vmatpush.bf16.msra.mxu0 0
      %339 = vmatpush.bf16.msra.mxu0 0
      %340 = vmatpush.bf16.msra.mxu0 0
      %341 = vmatpush.bf16.msra.mxu0 0
      %342 = vmatpush.bf16.msra.mxu0 0
      %343 = vmatpush.bf16.msra.mxu0 0
      %344 = vmatpush.bf16.msra.mxu0 %v321
      %345 = vmatmul.bf16.gmra.mxu0 %v314
      %v346 = vpop.f32.mrf.mxu0
      %v347 = vadd.f32 %v295, %v346
      %v348 = vpop.f32.mrf.mxu0
      %v349 = vadd.f32 %v300, %v348
      %350 = vdwg.mxu0
      %v351 = vmul.f32 %v333, 0.01
      %v352 = vmul.f32 %v347, 0.01
      %v353 = vmul.f32 %v335, 0.01
      %v354 = vmul.f32 %v349, 0.01
      %v355 = vmax.f32 %v333, %v351
      %v356 = vmax.f32 %v347, %v352
      %v357 = vmax.f32 %v335, %v353
      %v358 = vmax.f32 %v349, %v354
      %v359 = vld [vmem:[%s274] sm:$0xff]
      %v360 = vld [vmem:[%s274 + $0x8] sm:$0xff]
      %362 = vset.pattern.permute.xlu0 0
      %363 = vperm.xlu0 %362, %v359
      %v364 = vpop.permute.xlu0 %363
      %367 = vset.pattern.permute.xlu0 0
      %368 = vperm.xlu0 %367, %v360
      %v369 = vpop.permute.xlu0 %368
      %v371 = vmul.f32 %v364, %v355
      %v372 = vmul.f32 %v364, %v356
      %v373 = vmul.f32 %v369, %v357
      %v374 = vmul.f32 %v369, %v358
      %v375 = vld [vmem:[%s4] sm:$0xff]
      %v376 = vld [vmem:[%s4 + $0x8] sm:$0xff]
      %378 = vset.pattern.permute.xlu0 0
      %379 = vperm.xlu0 %378, %v375
      %v380 = vpop.permute.xlu0 %379
      %383 = vset.pattern.permute.xlu0 0
      %384 = vperm.xlu0 %383, %v376
      %v385 = vpop.permute.xlu0 %384
      %v387 = vadd.f32 %v371, %v380
      %v388 = vadd.f32 %v372, %v380
      %v389 = vadd.f32 %v373, %v385
      %v390 = vadd.f32 %v374, %v385
      %v391 = vmul.f32 %v387, 0.01
      %v392 = vmul.f32 %v388, 0.01
      %v393 = vmul.f32 %v389, 0.01
      %v394 = vmul.f32 %v390, 0.01
      %v395 = vmax.f32 %v387, %v391
      %v396 = vmax.f32 %v388, %v392
      %v397 = vmax.f32 %v389, %v393
      %v398 = vmax.f32 %v390, %v394
      %v399 = vpack.c.bf16 %v396, %v395
      %v400 = vpack.c.bf16 %v398, %v397
      %401 = vst [vmem:[%s284] sm:$0xff] %v399
      %402 = vst [vmem:[%s284 + $0x8] sm:$0xff] %v400
      %s403 = smul.u32 2, %s21
      %p404 = scmp.lt.s32.totalorder %s20, 1
      %s405 = scalar_select %p404, %s20, 1
      %p406 = scmp.lt.s32.totalorder %s403, 1
      %s407 = scalar_select %p406, %s403, 1
      %s408 = smul.addr %s405, 4
      %s409 = sadd.s32 %s407, %s408
      %s410 = smul.addr %s409, 4
      %s411 = scalar_lea.vmem %s5, %s410
      // Predicated region
      $region41: #{conv2d_channel.5} parent=39 // pred_check
        %p412 = pneg %p165
      $region42: #{conv2d_channel.5} parent=39 // pred_check_branch
        %414 = sbr.rel (%p412) target = $region44
      $region43: #{conv2d_channel.5} parent=39 // pred_region
        %s415 = smul.u32 2, %s21
      $region44: #{conv2d_channel.5} parent=39 // pred_fallthru
        _
    $region40: #{conv2d_channel.5} parent=5 // pred_fallthru
      _
    %p416 = scmp.le.s32.totalorder 2, %s11
    // Predicated region
    $region45: #{conv2d_channel.5} parent=5 // pred_check
      %p417 = pneg %p416
    $region46: #{conv2d_channel.5} parent=5 // pred_check_branch
      %419 = sbr.rel (%p417) target = $region48
    $region47: #{conv2d_channel.5} parent=5 // pred_region
      %s420 = ssub.s32 %s11, 2
      // Predicated region
      $region49: #{conv2d_channel.5} parent=47 // pred_check
        %p421 = pneg %p171
      $region50: #{conv2d_channel.5} parent=47 // pred_check_branch
        %423 = sbr.rel (%p421) target = $region52
      $region51: #{conv2d_channel.5} parent=47 // pred_region
        %s424 = smul.u32 2, %s23
        %p425 = scmp.lt.s32.totalorder %s22, 1
        %s426 = scalar_select %p425, %s22, 1
        %p427 = scmp.lt.s32.totalorder %s424, 1
        %s428 = scalar_select %p427, %s424, 1
        %s429 = smul.addr %s426, 4
        %s430 = sadd.s32 %s428, %s429
        %s431 = smul.addr %s430, 4
        %s432 = scalar_lea.vmem %s5, %s431
      $region52: #{conv2d_channel.5} parent=47 // pred_fallthru
        _
    $region48: #{conv2d_channel.5} parent=5 // pred_fallthru
      _
  $region6: #{conv2d_channel.5} parent=0 // loop_footer
    %s15 = sadd.s32 1, %s11
  $region7: #{conv2d_channel.5} parent=0 // loop_footer_branch
    %10 = sbr.rel target = $region3
  $region8: #{conv2d_channel.5} parent=0 // loop_exit
    _

</llo_original>
